<compile_context>
chip_gen: v6e
topology: v6e:2x2x1
jax: 0.10.0
libtpu: 0.0.40
codegen_flags: <defaults>
</compile_context>

<pallas_src>
import functools

import jax
import jax.numpy as jnp
from jax import lax
from jax.experimental import pallas as pl
from jax.experimental.pallas import tpu as pltpu

EPS = 1e-5  # torch.nn.InstanceNorm2d default eps


# ----------------------------- in-kernel helpers -----------------------------
def _per_channel_stats(t3, C, W, inv_hw):
    """Per-sample, per-channel InstanceNorm stats for a (NB, H, W*C) channel-interleaved
    tensor.  Returns (mean, inv_std), each (NB, 1, W*C), broadcast-ready against t3."""
    NB = t3.shape[0]
    rs = jnp.sum(t3, axis=1)                               # (NB, W*C)  sublane reduce
    rss = jnp.sum(t3 * t3, axis=1)                         # (NB, W*C)
    ch_s = jnp.sum(rs.reshape(NB, W, C), axis=1)           # (NB, C)
    ch_ss = jnp.sum(rss.reshape(NB, W, C), axis=1)         # (NB, C)
    m = ch_s * inv_hw
    var = jnp.maximum(ch_ss * inv_hw - m * m, 0.0)         # clamp: one-pass var can cancel < 0
    inv_std = lax.rsqrt(var + EPS)
    m_b = jnp.tile(m, (1, W)).reshape(NB, 1, W * C)        # replicate across the W lane slots
    s_b = jnp.tile(inv_std, (1, W)).reshape(NB, 1, W * C)
    return m_b, s_b


def _shift_down(t, H):
    """out[r] = t[r-1] within each H-row sample; 0 on each sample's first row."""
    M = t.shape[0]
    rolled = pltpu.roll(t, 1, 0)                           # sublane rotate (XLU)
    row = lax.broadcasted_iota(jnp.int32, (M, 1), 0)
    return jnp.where(row % H == 0, 0.0, rolled)


def _shift_up(t, H):
    """out[r] = t[r+1] within each H-row sample; 0 on each sample's last row."""
    M = t.shape[0]
    rolled = pltpu.roll(t, M - 1, 0)                       # == roll by -1
    row = lax.broadcasted_iota(jnp.int32, (M, 1), 0)
    return jnp.where(row % H == H - 1, 0.0, rolled)


# --------------------------------- the kernel --------------------------------
def basic_block_kernel(x_ref,
                       g1_ref, b1_ref, gs_ref, bs_ref, w1_ref, cb1_ref,
                       g2_ref, b2_ref, w2s_ref, cb2s_ref,
                       o_ref, *, W, IC, OC):
    NB, H = x_ref.shape[0], x_ref.shape[1]
    M = NB * H
    inv_hw = 1.0 / float(H * W)
    f32, bf16 = jnp.float32, jnp.bfloat16

    x3 = x_ref[...]                                        # (NB, H, W*IC), f32, lane-dense

    # ---- InstanceNorm(x) stats, shared by main & skip paths; affine folded to x*A + B ----
    m_b, s_b = _per_channel_stats(x3, IC, W, inv_hw)
    a1 = s_b * g1_ref[...]
    h1 = jnp.maximum(x3 * a1 + (b1_ref[...] - m_b * a1), 0.0)   # main path IN + ReLU
    a_s = s_b * gs_ref[...]
    sk = jnp.maximum(x3 * a_s + (bs_ref[...] - m_b * a_s), 0.0)  # skip path IN + ReLU

    # ---- Conv1 (3x3, pad=1): ONE MXU push, K = 3*W*IC ----
    h1f = h1.reshape(M, W * IC)
    lhs1 = jnp.concatenate([_shift_down(h1f, H), h1f, _shift_up(h1f, H)], axis=-1)
    y1 = jnp.dot(lhs1.astype(bf16), w1_ref[...],
                 preferred_element_type=f32) + cb1_ref[...]      # (M, W*OC)

    # ---- InstanceNorm(oc) + ReLU ----
    y1_3 = y1.reshape(NB, H, W * OC)
    m2, s2 = _per_channel_stats(y1_3, OC, W, inv_hw)
    a2 = s2 * g2_ref[...]
    h2 = jnp.maximum(y1_3 * a2 + (b2_ref[...] - m2 * a2), 0.0)

    # ---- Conv2 (3x3, pad=1) fused with skip 1x1 conv: ONE MXU push, K = 3*W*OC + W*IC ----
    h2f = h2.reshape(M, W * OC)
    skf = sk.reshape(M, W * IC)
    lhs2 = jnp.concatenate([_shift_down(h2f, H), h2f, _shift_up(h2f, H), skf], axis=-1)
    out = jnp.dot(lhs2.astype(bf16), w2s_ref[...],
                  preferred_element_type=f32) + cb2s_ref[...]    # (M, W*OC), bias = cb2 + cbs

    # ---- lane-dense output store: last dim W*OC = 128 ----
    o_ref[...] = out.reshape(NB, H, W * OC)


# ------------------------------ host-side helpers -----------------------------
def _banded_weight_3x3(w_hwio, W):
    """(3,3,Cin,Cout) HWIO kernel -> (3*W*Cin, W*Cout) banded block-Toeplitz weight,
    bands stacked along K in dy order (dy=0 pairs with the 'down'-shifted window)."""
    kh, kw, cin, cout = w_hwio.shape
    w = w_hwio.astype(jnp.float32)
    bands = []
    for dy in range(kh):
        b = jnp.zeros((W * cin, W * cout), jnp.float32)
        for dx in range(kw):
            e = jnp.eye(W, k=1 - dx, dtype=jnp.float32)    # E[win, w] = 1 iff win == w+dx-1
            b = b + jnp.kron(e, w[dy, dx])
        bands.append(b)
    return jnp.concatenate(bands, axis=0)


def _auto_num_blocks(N):
    """2 fat blocks on multi-TensorCore chips (v7x / megacore), 1 on single-TC (v5e/v6e)."""
    kind = ""
    try:
        kind = jax.devices()[0].device_kind.lower()
    except Exception:
        pass
    multi_tc = any(tag in kind for tag in ("v4", "v5p", "7"))
    return 2 if (multi_tc and N >= 2 and N % 2 == 0) else 1


def basic_block_pallas(x_nhwc, params, num_blocks=None):
    N, H, W, IC = x_nhwc.shape
    OC = params["w1"].shape[-1]
    f32, bf16 = jnp.float32, jnp.bfloat16

    if num_blocks is None:
        num_blocks = _auto_num_blocks(N)
    assert N % num_blocks == 0
    NB = N // num_blocks                                   # samples per grid step (M = NB*H)

    x2d = x_nhwc.astype(f32).reshape(N, H, W * IC)         # channel-interleaved, lane-dense

    def tile_c(v):  # per-channel vector -> (1, W*C) tiled to the interleaved layout
        return jnp.tile(v.astype(f32).reshape(1, -1), (1, W))

    w1f = _banded_weight_3x3(params["w1"], W).astype(bf16)              # (3*W*IC, W*OC)
    w2b = _banded_weight_3x3(params["w2"], W)                           # (3*W*OC, W*OC)
    wsb = jnp.kron(jnp.eye(W, dtype=f32), params["ws"].astype(f32))     # (W*IC, W*OC)
    w2s = jnp.concatenate([w2b, wsb], axis=0).astype(bf16)              # (3*W*OC + W*IC, W*OC)

    args = [
        tile_c(params["g1"]), tile_c(params["b1"]),
        tile_c(params["gs"]), tile_c(params["bs"]),
        w1f, tile_c(params["cb1"]),
        tile_c(params["g2"]), tile_c(params["b2"]),
        w2s, tile_c(params["cb2"] + params["cbs"]),        # conv2 bias + skip bias, pre-added
    ]

    def const_spec(a):                                     # all constants are 2D
        return pl.BlockSpec(a.shape, lambda n: (0, 0))

    out2d = pl.pallas_call(
        functools.partial(basic_block_kernel, W=W, IC=IC, OC=OC),
        out_shape=jax.ShapeDtypeStruct((N, H, W * OC), f32),
        grid=(num_blocks,),
        in_specs=([pl.BlockSpec((NB, H, W * IC), lambda n: (n, 0, 0))] +
                  [const_spec(a) for a in args]),
        out_specs=pl.BlockSpec((NB, H, W * OC), lambda n: (n, 0, 0)),
        compiler_params=pltpu.CompilerParams(
            dimension_semantics=("parallel",)),            # batch blocks are independent
    )(x2d, *args)

    return out2d.reshape(N, H, W, OC)


# ---------------- pure-JAX reference (for verification) ----------------
def _inorm_relu_ref(t, g, b):
    m = jnp.mean(t, axis=(1, 2), keepdims=True)
    v = jnp.mean((t - m) ** 2, axis=(1, 2), keepdims=True)
    tn = (t - m) * lax.rsqrt(v + EPS)
    return jnp.maximum(tn * g.reshape(1, 1, 1, -1) + b.reshape(1, 1, 1, -1), 0.0)


def _conv_same_ref(x, w_hwio, bias):
    y = lax.conv_general_dilated(x, w_hwio, window_strides=(1, 1), padding="SAME",
                                 dimension_numbers=("NHWC", "HWIO", "NHWC"))
    return y + bias.reshape(1, 1, 1, -1)


def basic_block_ref(x_nhwc, params):
    h = _inorm_relu_ref(x_nhwc, params["g1"], params["b1"])
    h = _conv_same_ref(h, params["w1"], params["cb1"])
    h = _inorm_relu_ref(h, params["g2"], params["b2"])
    h = _conv_same_ref(h, params["w2"], params["cb2"])
    s = _inorm_relu_ref(x_nhwc, params["gs"], params["bs"])
    s = _conv_same_ref(s, params["ws"].reshape(1, 1, *params["ws"].shape),
                       params["cbs"])
    return h + s


if __name__ == "__main__":
    # in_shape=(4,16,16), out_shape=(8,16,16) -> skip layer present (ic != oc)
    N, IC, H, W, OC = 2, 4, 16, 16, 8

    key = jax.random.PRNGKey(0)
    ks = jax.random.split(key, 16)

    x_nchw = jax.random.normal(ks[0], (N, IC, H, W), jnp.float32)
    x_nhwc = jnp.transpose(x_nchw, (0, 2, 3, 1))

    params = dict(
        g1=1.0 + 0.1 * jax.random.normal(ks[1], (IC,), jnp.float32),
        b1=0.1 * jax.random.normal(ks[2], (IC,), jnp.float32),
        w1=0.1 * jax.random.normal(ks[3], (3, 3, IC, OC), jnp.float32),   # HWIO
        cb1=0.1 * jax.random.normal(ks[4], (OC,), jnp.float32),
        g2=1.0 + 0.1 * jax.random.normal(ks[5], (OC,), jnp.float32),
        b2=0.1 * jax.random.normal(ks[6], (OC,), jnp.float32),
        w2=0.1 * jax.random.normal(ks[7], (3, 3, OC, OC), jnp.float32),
        cb2=0.1 * jax.random.normal(ks[8], (OC,), jnp.float32),
        gs=1.0 + 0.1 * jax.random.normal(ks[9], (IC,), jnp.float32),
        bs=0.1 * jax.random.normal(ks[10], (IC,), jnp.float32),
        ws=0.1 * jax.random.normal(ks[11], (IC, OC), jnp.float32),        # 1x1 conv
        cbs=0.1 * jax.random.normal(ks[12], (OC,), jnp.float32),
    )

    out = basic_block_pallas(x_nhwc, params)
    out = jax.block_until_ready(out)

    ref = jax.block_until_ready(basic_block_ref(x_nhwc, params))
    assert out.shape == (N, H, W, OC)
    # Looser tolerance than the pure-f32 version because the matmul operands are bf16
    # (f32 accumulation); observed error is ~1e-3 scale, bound set well above that.
    assert jnp.allclose(out, ref, atol=2e-2, rtol=2e-2), \
        f"max abs err = {jnp.max(jnp.abs(out - ref))}"

    print("KERNEL_OK")
</pallas_src>

<mosaic_0001>
module attributes {stable_mosaic.version = 11 : i64} {
  func.func @basic_block_kernel(%arg0: i32, %arg1: memref<2x16x64xf32, #tpu.memory_space<vmem>>, %arg2: memref<1x64xf32, #tpu.memory_space<vmem>>, %arg3: memref<1x64xf32, #tpu.memory_space<vmem>>, %arg4: memref<1x64xf32, #tpu.memory_space<vmem>>, %arg5: memref<1x64xf32, #tpu.memory_space<vmem>>, %arg6: memref<192x128xbf16, #tpu.memory_space<vmem>>, %arg7: memref<1x128xf32, #tpu.memory_space<vmem>>, %arg8: memref<1x128xf32, #tpu.memory_space<vmem>>, %arg9: memref<1x128xf32, #tpu.memory_space<vmem>>, %arg10: memref<448x128xbf16, #tpu.memory_space<vmem>>, %arg11: memref<1x128xf32, #tpu.memory_space<vmem>>, %arg12: memref<2x16x128xf32, #tpu.memory_space<vmem>>) attributes {dimension_semantics = [#tpu.dimension_semantics<parallel>], iteration_bounds = array<i64: 1>, scalar_prefetch = 0 : i64, scratch_operands = 0 : i64, tpu.core_type = #tpu.core_type<tc>, window_params = [{transform_indices = @transform_0, window_bounds = array<i64: 2, 16, 64>}, {pipeline_mode = #tpu.pipeline_mode<synchronous>, transform_indices = @transform_1, window_bounds = array<i64: 1, 64>}, {pipeline_mode = #tpu.pipeline_mode<synchronous>, transform_indices = @transform_2, window_bounds = array<i64: 1, 64>}, {pipeline_mode = #tpu.pipeline_mode<synchronous>, transform_indices = @transform_3, window_bounds = array<i64: 1, 64>}, {pipeline_mode = #tpu.pipeline_mode<synchronous>, transform_indices = @transform_4, window_bounds = array<i64: 1, 64>}, {pipeline_mode = #tpu.pipeline_mode<synchronous>, transform_indices = @transform_5, window_bounds = array<i64: 192, 128>}, {pipeline_mode = #tpu.pipeline_mode<synchronous>, transform_indices = @transform_6, window_bounds = array<i64: 1, 128>}, {pipeline_mode = #tpu.pipeline_mode<synchronous>, transform_indices = @transform_7, window_bounds = array<i64: 1, 128>}, {pipeline_mode = #tpu.pipeline_mode<synchronous>, transform_indices = @transform_8, window_bounds = array<i64: 1, 128>}, {pipeline_mode = #tpu.pipeline_mode<synchronous>, transform_indices = @transform_9, window_bounds = array<i64: 448, 128>}, {pipeline_mode = #tpu.pipeline_mode<synchronous>, transform_indices = @transform_10, window_bounds = array<i64: 1, 128>}, {transform_indices = @transform_11, window_bounds = array<i64: 2, 16, 128>}]} {
    %c0 = arith.constant 0 : index
    %c0_0 = arith.constant 0 : index
    %c0_1 = arith.constant 0 : index
    %0 = vector.load %arg1[%c0, %c0_0, %c0_1] : memref<2x16x64xf32, #tpu.memory_space<vmem>>, vector<2x16x64xf32>
    %cst = arith.constant dense<0.000000e+00> : vector<2x64xf32>
    %1 = vector.multi_reduction <add>, %0, %cst [1] : vector<2x16x64xf32> to vector<2x64xf32>
    %2 = arith.mulf %0, %0 : vector<2x16x64xf32>
    %cst_2 = arith.constant dense<0.000000e+00> : vector<2x64xf32>
    %3 = vector.multi_reduction <add>, %2, %cst_2 [1] : vector<2x16x64xf32> to vector<2x64xf32>
    %4 = vector.shape_cast %1 : vector<2x64xf32> to vector<2x16x4xf32>
    %cst_3 = arith.constant dense<0.000000e+00> : vector<2x4xf32>
    %5 = vector.multi_reduction <add>, %4, %cst_3 [1] : vector<2x16x4xf32> to vector<2x4xf32>
    %6 = vector.shape_cast %3 : vector<2x64xf32> to vector<2x16x4xf32>
    %cst_4 = arith.constant dense<0.000000e+00> : vector<2x4xf32>
    %7 = vector.multi_reduction <add>, %6, %cst_4 [1] : vector<2x16x4xf32> to vector<2x4xf32>
    %cst_5 = arith.constant 3.906250e-03 : f32
    %8 = vector.broadcast %cst_5 : f32 to vector<2x4xf32>
    %9 = arith.mulf %5, %8 : vector<2x4xf32>
    %cst_6 = arith.constant 3.906250e-03 : f32
    %10 = vector.broadcast %cst_6 : f32 to vector<2x4xf32>
    %11 = arith.mulf %7, %10 : vector<2x4xf32>
    %12 = arith.mulf %9, %9 : vector<2x4xf32>
    %13 = arith.subf %11, %12 : vector<2x4xf32>
    %cst_7 = arith.constant 0.000000e+00 : f32
    %14 = vector.broadcast %cst_7 : f32 to vector<2x4xf32>
    %15 = arith.maximumf %13, %14 : vector<2x4xf32>
    %cst_8 = arith.constant 9.99999974E-6 : f32
    %16 = vector.broadcast %cst_8 : f32 to vector<2x4xf32>
    %17 = arith.addf %15, %16 : vector<2x4xf32>
    %18 = math.rsqrt %17 : vector<2x4xf32>
    %19 = tpu.concatenate %9, %9, %9, %9, %9, %9, %9, %9, %9, %9, %9, %9, %9, %9, %9, %9 in 1 : vector<2x4xf32>, vector<2x4xf32>, vector<2x4xf32>, vector<2x4xf32>, vector<2x4xf32>, vector<2x4xf32>, vector<2x4xf32>, vector<2x4xf32>, vector<2x4xf32>, vector<2x4xf32>, vector<2x4xf32>, vector<2x4xf32>, vector<2x4xf32>, vector<2x4xf32>, vector<2x4xf32>, vector<2x4xf32> -> vector<2x64xf32>
    %20 = vector.shape_cast %19 : vector<2x64xf32> to vector<2x1x64xf32>
    %21 = tpu.concatenate %18, %18, %18, %18, %18, %18, %18, %18, %18, %18, %18, %18, %18, %18, %18, %18 in 1 : vector<2x4xf32>, vector<2x4xf32>, vector<2x4xf32>, vector<2x4xf32>, vector<2x4xf32>, vector<2x4xf32>, vector<2x4xf32>, vector<2x4xf32>, vector<2x4xf32>, vector<2x4xf32>, vector<2x4xf32>, vector<2x4xf32>, vector<2x4xf32>, vector<2x4xf32>, vector<2x4xf32>, vector<2x4xf32> -> vector<2x64xf32>
    %22 = vector.shape_cast %21 : vector<2x64xf32> to vector<2x1x64xf32>
    %c0_9 = arith.constant 0 : index
    %c0_10 = arith.constant 0 : index
    %23 = vector.load %arg2[%c0_9, %c0_10] : memref<1x64xf32, #tpu.memory_space<vmem>>, vector<1x64xf32>
    %24 = vector.shape_cast %23 : vector<1x64xf32> to vector<1x1x64xf32>
    %25 = vector.broadcast %24 : vector<1x1x64xf32> to vector<2x1x64xf32>
    %26 = arith.mulf %22, %25 : vector<2x1x64xf32>
    %27 = vector.broadcast %26 : vector<2x1x64xf32> to vector<2x16x64xf32>
    %28 = arith.mulf %0, %27 : vector<2x16x64xf32>
    %c0_11 = arith.constant 0 : index
    %c0_12 = arith.constant 0 : index
    %29 = vector.load %arg3[%c0_11, %c0_12] : memref<1x64xf32, #tpu.memory_space<vmem>>, vector<1x64xf32>
    %30 = arith.mulf %20, %26 : vector<2x1x64xf32>
    %31 = vector.shape_cast %29 : vector<1x64xf32> to vector<1x1x64xf32>
    %32 = vector.broadcast %31 : vector<1x1x64xf32> to vector<2x1x64xf32>
    %33 = arith.subf %32, %30 : vector<2x1x64xf32>
    %34 = vector.broadcast %33 : vector<2x1x64xf32> to vector<2x16x64xf32>
    %35 = arith.addf %28, %34 : vector<2x16x64xf32>
    %cst_13 = arith.constant 0.000000e+00 : f32
    %36 = vector.broadcast %cst_13 : f32 to vector<2x16x64xf32>
    %37 = arith.maximumf %35, %36 : vector<2x16x64xf32>
    %c0_14 = arith.constant 0 : index
    %c0_15 = arith.constant 0 : index
    %38 = vector.load %arg4[%c0_14, %c0_15] : memref<1x64xf32, #tpu.memory_space<vmem>>, vector<1x64xf32>
    %39 = vector.shape_cast %38 : vector<1x64xf32> to vector<1x1x64xf32>
    %40 = vector.broadcast %39 : vector<1x1x64xf32> to vector<2x1x64xf32>
    %41 = arith.mulf %22, %40 : vector<2x1x64xf32>
    %42 = vector.broadcast %41 : vector<2x1x64xf32> to vector<2x16x64xf32>
    %43 = arith.mulf %0, %42 : vector<2x16x64xf32>
    %c0_16 = arith.constant 0 : index
    %c0_17 = arith.constant 0 : index
    %44 = vector.load %arg5[%c0_16, %c0_17] : memref<1x64xf32, #tpu.memory_space<vmem>>, vector<1x64xf32>
    %45 = arith.mulf %20, %41 : vector<2x1x64xf32>
    %46 = vector.shape_cast %44 : vector<1x64xf32> to vector<1x1x64xf32>
    %47 = vector.broadcast %46 : vector<1x1x64xf32> to vector<2x1x64xf32>
    %48 = arith.subf %47, %45 : vector<2x1x64xf32>
    %49 = vector.broadcast %48 : vector<2x1x64xf32> to vector<2x16x64xf32>
    %50 = arith.addf %43, %49 : vector<2x16x64xf32>
    %cst_18 = arith.constant 0.000000e+00 : f32
    %51 = vector.broadcast %cst_18 : f32 to vector<2x16x64xf32>
    %52 = arith.maximumf %50, %51 : vector<2x16x64xf32>
    %53 = vector.shape_cast %37 : vector<2x16x64xf32> to vector<32x64xf32>
    %c1_i32 = arith.constant 1 : i32
    %54 = tpu.dynamic_rotate %53 by %c1_i32 dim 0 : vector<32x64xf32>, i32 -> vector<32x64xf32>
    %55 = tpu.iota {dimensions = array<i32: 0>} : vector<32x1xi32>
    %c16_i32 = arith.constant 16 : i32
    %c0_i32 = arith.constant 0 : i32
    %56 = arith.cmpi eq, %c16_i32, %c0_i32 : i32
    %c1_i32_19 = arith.constant 1 : i32
    %57 = arith.select %56, %c1_i32_19, %c16_i32 : i32
    %58 = vector.broadcast %57 : i32 to vector<32x1xi32>
    %59 = arith.remsi %55, %58 : vector<32x1xi32>
    %c0_i32_20 = arith.constant 0 : i32
    %60 = vector.broadcast %c0_i32_20 : i32 to vector<32x1xi32>
    %61 = arith.cmpi ne, %59, %60 : vector<32x1xi32>
    %c0_i32_21 = arith.constant 0 : i32
    %62 = vector.broadcast %c0_i32_21 : i32 to vector<32x1xi32>
    %63 = arith.cmpi slt, %59, %62 : vector<32x1xi32>
    %c0_i32_22 = arith.constant 0 : i32
    %64 = arith.cmpi slt, %57, %c0_i32_22 : i32
    %65 = vector.broadcast %64 : i1 to vector<32x1xi1>
    %66 = vector.broadcast %65 : vector<32x1xi1> to vector<32x1xi1>
    %67 = arith.xori %63, %66 : vector<32x1xi1>
    %68 = arith.andi %67, %61 : vector<32x1xi1>
    %69 = vector.broadcast %57 : i32 to vector<32x1xi32>
    %70 = arith.addi %59, %69 : vector<32x1xi32>
    %71 = arith.select %68, %70, %59 : vector<32x1xi1>, vector<32x1xi32>
    %c0_i32_23 = arith.constant 0 : i32
    %72 = vector.broadcast %c0_i32_23 : i32 to vector<32x1xi32>
    %73 = arith.cmpi eq, %71, %72 : vector<32x1xi32>
    %cst_24 = arith.constant 0.000000e+00 : f32
    %74 = vector.shape_cast %73 : vector<32x1xi1> to vector<32x1xi1>
    %75 = vector.broadcast %74 : vector<32x1xi1> to vector<32x64xi1>
    %76 = vector.broadcast %cst_24 : f32 to vector<32x64xf32>
    %77 = arith.select %75, %76, %54 : vector<32x64xi1>, vector<32x64xf32>
    %c31_i32 = arith.constant 31 : i32
    %78 = tpu.dynamic_rotate %53 by %c31_i32 dim 0 : vector<32x64xf32>, i32 -> vector<32x64xf32>
    %79 = tpu.iota {dimensions = array<i32: 0>} : vector<32x1xi32>
    %c16_i32_25 = arith.constant 16 : i32
    %c0_i32_26 = arith.constant 0 : i32
    %80 = arith.cmpi eq, %c16_i32_25, %c0_i32_26 : i32
    %c1_i32_27 = arith.constant 1 : i32
    %81 = arith.select %80, %c1_i32_27, %c16_i32_25 : i32
    %82 = vector.broadcast %81 : i32 to vector<32x1xi32>
    %83 = arith.remsi %79, %82 : vector<32x1xi32>
    %c0_i32_28 = arith.constant 0 : i32
    %84 = vector.broadcast %c0_i32_28 : i32 to vector<32x1xi32>
    %85 = arith.cmpi ne, %83, %84 : vector<32x1xi32>
    %c0_i32_29 = arith.constant 0 : i32
    %86 = vector.broadcast %c0_i32_29 : i32 to vector<32x1xi32>
    %87 = arith.cmpi slt, %83, %86 : vector<32x1xi32>
    %c0_i32_30 = arith.constant 0 : i32
    %88 = arith.cmpi slt, %81, %c0_i32_30 : i32
    %89 = vector.broadcast %88 : i1 to vector<32x1xi1>
    %90 = vector.broadcast %89 : vector<32x1xi1> to vector<32x1xi1>
    %91 = arith.xori %87, %90 : vector<32x1xi1>
    %92 = arith.andi %91, %85 : vector<32x1xi1>
    %93 = vector.broadcast %81 : i32 to vector<32x1xi32>
    %94 = arith.addi %83, %93 : vector<32x1xi32>
    %95 = arith.select %92, %94, %83 : vector<32x1xi1>, vector<32x1xi32>
    %c15_i32 = arith.constant 15 : i32
    %96 = vector.broadcast %c15_i32 : i32 to vector<32x1xi32>
    %97 = arith.cmpi eq, %95, %96 : vector<32x1xi32>
    %cst_31 = arith.constant 0.000000e+00 : f32
    %98 = vector.shape_cast %97 : vector<32x1xi1> to vector<32x1xi1>
    %99 = vector.broadcast %98 : vector<32x1xi1> to vector<32x64xi1>
    %100 = vector.broadcast %cst_31 : f32 to vector<32x64xf32>
    %101 = arith.select %99, %100, %78 : vector<32x64xi1>, vector<32x64xf32>
    %102 = tpu.concatenate %77, %53, %101 in 1 : vector<32x64xf32>, vector<32x64xf32>, vector<32x64xf32> -> vector<32x192xf32>
    %103 = arith.truncf %102 : vector<32x192xf32> to vector<32x192xbf16>
    %c0_32 = arith.constant 0 : index
    %c0_33 = arith.constant 0 : index
    %104 = vector.load %arg6[%c0_32, %c0_33] : memref<192x128xbf16, #tpu.memory_space<vmem>>, vector<192x128xbf16>
    %cst_34 = arith.constant dense<0.000000e+00> : vector<32x128xf32>
    %105 = tpu.matmul %103, %104, %cst_34 {dimension_numbers = #tpu.dot_dimension_numbers<[1], [0], [0], [1], [0, 0, 1, 1], [], []>} : vector<32x192xbf16>, vector<192x128xbf16>, vector<32x128xf32> -> vector<32x128xf32>
    %c0_35 = arith.constant 0 : index
    %c0_36 = arith.constant 0 : index
    %106 = vector.load %arg7[%c0_35, %c0_36] : memref<1x128xf32, #tpu.memory_space<vmem>>, vector<1x128xf32>
    %107 = vector.broadcast %106 : vector<1x128xf32> to vector<32x128xf32>
    %108 = arith.addf %105, %107 : vector<32x128xf32>
    %109 = vector.shape_cast %108 : vector<32x128xf32> to vector<2x16x128xf32>
    %cst_37 = arith.constant dense<0.000000e+00> : vector<2x128xf32>
    %110 = vector.multi_reduction <add>, %109, %cst_37 [1] : vector<2x16x128xf32> to vector<2x128xf32>
    %111 = arith.mulf %109, %109 : vector<2x16x128xf32>
    %cst_38 = arith.constant dense<0.000000e+00> : vector<2x128xf32>
    %112 = vector.multi_reduction <add>, %111, %cst_38 [1] : vector<2x16x128xf32> to vector<2x128xf32>
    %113 = vector.shape_cast %110 : vector<2x128xf32> to vector<2x16x8xf32>
    %cst_39 = arith.constant dense<0.000000e+00> : vector<2x8xf32>
    %114 = vector.multi_reduction <add>, %113, %cst_39 [1] : vector<2x16x8xf32> to vector<2x8xf32>
    %115 = vector.shape_cast %112 : vector<2x128xf32> to vector<2x16x8xf32>
    %cst_40 = arith.constant dense<0.000000e+00> : vector<2x8xf32>
    %116 = vector.multi_reduction <add>, %115, %cst_40 [1] : vector<2x16x8xf32> to vector<2x8xf32>
    %cst_41 = arith.constant 3.906250e-03 : f32
    %117 = vector.broadcast %cst_41 : f32 to vector<2x8xf32>
    %118 = arith.mulf %114, %117 : vector<2x8xf32>
    %cst_42 = arith.constant 3.906250e-03 : f32
    %119 = vector.broadcast %cst_42 : f32 to vector<2x8xf32>
    %120 = arith.mulf %116, %119 : vector<2x8xf32>
    %121 = arith.mulf %118, %118 : vector<2x8xf32>
    %122 = arith.subf %120, %121 : vector<2x8xf32>
    %cst_43 = arith.constant 0.000000e+00 : f32
    %123 = vector.broadcast %cst_43 : f32 to vector<2x8xf32>
    %124 = arith.maximumf %122, %123 : vector<2x8xf32>
    %cst_44 = arith.constant 9.99999974E-6 : f32
    %125 = vector.broadcast %cst_44 : f32 to vector<2x8xf32>
    %126 = arith.addf %124, %125 : vector<2x8xf32>
    %127 = math.rsqrt %126 : vector<2x8xf32>
    %128 = tpu.concatenate %118, %118, %118, %118, %118, %118, %118, %118, %118, %118, %118, %118, %118, %118, %118, %118 in 1 : vector<2x8xf32>, vector<2x8xf32>, vector<2x8xf32>, vector<2x8xf32>, vector<2x8xf32>, vector<2x8xf32>, vector<2x8xf32>, vector<2x8xf32>, vector<2x8xf32>, vector<2x8xf32>, vector<2x8xf32>, vector<2x8xf32>, vector<2x8xf32>, vector<2x8xf32>, vector<2x8xf32>, vector<2x8xf32> -> vector<2x128xf32>
    %129 = vector.shape_cast %128 : vector<2x128xf32> to vector<2x1x128xf32>
    %130 = tpu.concatenate %127, %127, %127, %127, %127, %127, %127, %127, %127, %127, %127, %127, %127, %127, %127, %127 in 1 : vector<2x8xf32>, vector<2x8xf32>, vector<2x8xf32>, vector<2x8xf32>, vector<2x8xf32>, vector<2x8xf32>, vector<2x8xf32>, vector<2x8xf32>, vector<2x8xf32>, vector<2x8xf32>, vector<2x8xf32>, vector<2x8xf32>, vector<2x8xf32>, vector<2x8xf32>, vector<2x8xf32>, vector<2x8xf32> -> vector<2x128xf32>
    %131 = vector.shape_cast %130 : vector<2x128xf32> to vector<2x1x128xf32>
    %c0_45 = arith.constant 0 : index
    %c0_46 = arith.constant 0 : index
    %132 = vector.load %arg8[%c0_45, %c0_46] : memref<1x128xf32, #tpu.memory_space<vmem>>, vector<1x128xf32>
    %133 = vector.shape_cast %132 : vector<1x128xf32> to vector<1x1x128xf32>
    %134 = vector.broadcast %133 : vector<1x1x128xf32> to vector<2x1x128xf32>
    %135 = arith.mulf %131, %134 : vector<2x1x128xf32>
    %136 = vector.broadcast %135 : vector<2x1x128xf32> to vector<2x16x128xf32>
    %137 = arith.mulf %109, %136 : vector<2x16x128xf32>
    %c0_47 = arith.constant 0 : index
    %c0_48 = arith.constant 0 : index
    %138 = vector.load %arg9[%c0_47, %c0_48] : memref<1x128xf32, #tpu.memory_space<vmem>>, vector<1x128xf32>
    %139 = arith.mulf %129, %135 : vector<2x1x128xf32>
    %140 = vector.shape_cast %138 : vector<1x128xf32> to vector<1x1x128xf32>
    %141 = vector.broadcast %140 : vector<1x1x128xf32> to vector<2x1x128xf32>
    %142 = arith.subf %141, %139 : vector<2x1x128xf32>
    %143 = vector.broadcast %142 : vector<2x1x128xf32> to vector<2x16x128xf32>
    %144 = arith.addf %137, %143 : vector<2x16x128xf32>
    %cst_49 = arith.constant 0.000000e+00 : f32
    %145 = vector.broadcast %cst_49 : f32 to vector<2x16x128xf32>
    %146 = arith.maximumf %144, %145 : vector<2x16x128xf32>
    %147 = vector.shape_cast %146 : vector<2x16x128xf32> to vector<32x128xf32>
    %148 = vector.shape_cast %52 : vector<2x16x64xf32> to vector<32x64xf32>
    %c1_i32_50 = arith.constant 1 : i32
    %149 = tpu.dynamic_rotate %147 by %c1_i32_50 dim 0 : vector<32x128xf32>, i32 -> vector<32x128xf32>
    %150 = tpu.iota {dimensions = array<i32: 0>} : vector<32x1xi32>
    %c16_i32_51 = arith.constant 16 : i32
    %c0_i32_52 = arith.constant 0 : i32
    %151 = arith.cmpi eq, %c16_i32_51, %c0_i32_52 : i32
    %c1_i32_53 = arith.constant 1 : i32
    %152 = arith.select %151, %c1_i32_53, %c16_i32_51 : i32
    %153 = vector.broadcast %152 : i32 to vector<32x1xi32>
    %154 = arith.remsi %150, %153 : vector<32x1xi32>
    %c0_i32_54 = arith.constant 0 : i32
    %155 = vector.broadcast %c0_i32_54 : i32 to vector<32x1xi32>
    %156 = arith.cmpi ne, %154, %155 : vector<32x1xi32>
    %c0_i32_55 = arith.constant 0 : i32
    %157 = vector.broadcast %c0_i32_55 : i32 to vector<32x1xi32>
    %158 = arith.cmpi slt, %154, %157 : vector<32x1xi32>
    %c0_i32_56 = arith.constant 0 : i32
    %159 = arith.cmpi slt, %152, %c0_i32_56 : i32
    %160 = vector.broadcast %159 : i1 to vector<32x1xi1>
    %161 = vector.broadcast %160 : vector<32x1xi1> to vector<32x1xi1>
    %162 = arith.xori %158, %161 : vector<32x1xi1>
    %163 = arith.andi %162, %156 : vector<32x1xi1>
    %164 = vector.broadcast %152 : i32 to vector<32x1xi32>
    %165 = arith.addi %154, %164 : vector<32x1xi32>
    %166 = arith.select %163, %165, %154 : vector<32x1xi1>, vector<32x1xi32>
    %c0_i32_57 = arith.constant 0 : i32
    %167 = vector.broadcast %c0_i32_57 : i32 to vector<32x1xi32>
    %168 = arith.cmpi eq, %166, %167 : vector<32x1xi32>
    %cst_58 = arith.constant 0.000000e+00 : f32
    %169 = vector.shape_cast %168 : vector<32x1xi1> to vector<32x1xi1>
    %170 = vector.broadcast %169 : vector<32x1xi1> to vector<32x128xi1>
    %171 = vector.broadcast %cst_58 : f32 to vector<32x128xf32>
    %172 = arith.select %170, %171, %149 : vector<32x128xi1>, vector<32x128xf32>
    %c31_i32_59 = arith.constant 31 : i32
    %173 = tpu.dynamic_rotate %147 by %c31_i32_59 dim 0 : vector<32x128xf32>, i32 -> vector<32x128xf32>
    %174 = tpu.iota {dimensions = array<i32: 0>} : vector<32x1xi32>
    %c16_i32_60 = arith.constant 16 : i32
    %c0_i32_61 = arith.constant 0 : i32
    %175 = arith.cmpi eq, %c16_i32_60, %c0_i32_61 : i32
    %c1_i32_62 = arith.constant 1 : i32
    %176 = arith.select %175, %c1_i32_62, %c16_i32_60 : i32
    %177 = vector.broadcast %176 : i32 to vector<32x1xi32>
    %178 = arith.remsi %174, %177 : vector<32x1xi32>
    %c0_i32_63 = arith.constant 0 : i32
    %179 = vector.broadcast %c0_i32_63 : i32 to vector<32x1xi32>
    %180 = arith.cmpi ne, %178, %179 : vector<32x1xi32>
    %c0_i32_64 = arith.constant 0 : i32
    %181 = vector.broadcast %c0_i32_64 : i32 to vector<32x1xi32>
    %182 = arith.cmpi slt, %178, %181 : vector<32x1xi32>
    %c0_i32_65 = arith.constant 0 : i32
    %183 = arith.cmpi slt, %176, %c0_i32_65 : i32
    %184 = vector.broadcast %183 : i1 to vector<32x1xi1>
    %185 = vector.broadcast %184 : vector<32x1xi1> to vector<32x1xi1>
    %186 = arith.xori %182, %185 : vector<32x1xi1>
    %187 = arith.andi %186, %180 : vector<32x1xi1>
    %188 = vector.broadcast %176 : i32 to vector<32x1xi32>
    %189 = arith.addi %178, %188 : vector<32x1xi32>
    %190 = arith.select %187, %189, %178 : vector<32x1xi1>, vector<32x1xi32>
    %c15_i32_66 = arith.constant 15 : i32
    %191 = vector.broadcast %c15_i32_66 : i32 to vector<32x1xi32>
    %192 = arith.cmpi eq, %190, %191 : vector<32x1xi32>
    %cst_67 = arith.constant 0.000000e+00 : f32
    %193 = vector.shape_cast %192 : vector<32x1xi1> to vector<32x1xi1>
    %194 = vector.broadcast %193 : vector<32x1xi1> to vector<32x128xi1>
    %195 = vector.broadcast %cst_67 : f32 to vector<32x128xf32>
    %196 = arith.select %194, %195, %173 : vector<32x128xi1>, vector<32x128xf32>
    %197 = tpu.concatenate %172, %147, %196, %148 in 1 : vector<32x128xf32>, vector<32x128xf32>, vector<32x128xf32>, vector<32x64xf32> -> vector<32x448xf32>
    %198 = arith.truncf %197 : vector<32x448xf32> to vector<32x448xbf16>
    %c0_68 = arith.constant 0 : index
    %c0_69 = arith.constant 0 : index
    %199 = vector.load %arg10[%c0_68, %c0_69] : memref<448x128xbf16, #tpu.memory_space<vmem>>, vector<448x128xbf16>
    %cst_70 = arith.constant dense<0.000000e+00> : vector<32x128xf32>
    %200 = tpu.matmul %198, %199, %cst_70 {dimension_numbers = #tpu.dot_dimension_numbers<[1], [0], [0], [1], [0, 0, 1, 1], [], []>} : vector<32x448xbf16>, vector<448x128xbf16>, vector<32x128xf32> -> vector<32x128xf32>
    %c0_71 = arith.constant 0 : index
    %c0_72 = arith.constant 0 : index
    %201 = vector.load %arg11[%c0_71, %c0_72] : memref<1x128xf32, #tpu.memory_space<vmem>>, vector<1x128xf32>
    %202 = vector.broadcast %201 : vector<1x128xf32> to vector<32x128xf32>
    %203 = arith.addf %200, %202 : vector<32x128xf32>
    %204 = vector.shape_cast %203 : vector<32x128xf32> to vector<2x16x128xf32>
    %c0_73 = arith.constant 0 : index
    %c0_74 = arith.constant 0 : index
    %c0_75 = arith.constant 0 : index
    %205 = vector.load %arg12[%c0_73, %c0_74, %c0_75] : memref<2x16x128xf32, #tpu.memory_space<vmem>>, vector<2x16x128xf32>
    tpu.vector_store %arg12[%c0_73, %c0_74, %c0_75], %204 {strides = array<i32>} : memref<2x16x128xf32, #tpu.memory_space<vmem>>, vector<2x16x128xf32>,
    return
  }
  func.func @transform_0(%arg0: i32) -> (i32, i32, i32) {
    %c0_i32 = arith.constant 0 : i32
    %c0_i32_0 = arith.constant 0 : i32
    %c0_i32_1 = arith.constant 0 : i32
    return %arg0, %c0_i32, %c0_i32_0 : i32, i32, i32
  }
  func.func @transform_1(%arg0: i32) -> (i32, i32) {
    %c0_i32 = arith.constant 0 : i32
    %c0_i32_0 = arith.constant 0 : i32
    %c0_i32_1 = arith.constant 0 : i32
    return %c0_i32, %c0_i32_0 : i32, i32
  }
  func.func @transform_2(%arg0: i32) -> (i32, i32) {
    %c0_i32 = arith.constant 0 : i32
    %c0_i32_0 = arith.constant 0 : i32
    %c0_i32_1 = arith.constant 0 : i32
    return %c0_i32, %c0_i32_0 : i32, i32
  }
  func.func @transform_3(%arg0: i32) -> (i32, i32) {
    %c0_i32 = arith.constant 0 : i32
    %c0_i32_0 = arith.constant 0 : i32
    %c0_i32_1 = arith.constant 0 : i32
    return %c0_i32, %c0_i32_0 : i32, i32
  }
  func.func @transform_4(%arg0: i32) -> (i32, i32) {
    %c0_i32 = arith.constant 0 : i32
    %c0_i32_0 = arith.constant 0 : i32
    %c0_i32_1 = arith.constant 0 : i32
    return %c0_i32, %c0_i32_0 : i32, i32
  }
  func.func @transform_5(%arg0: i32) -> (i32, i32) {
    %c0_i32 = arith.constant 0 : i32
    %c0_i32_0 = arith.constant 0 : i32
    %c0_i32_1 = arith.constant 0 : i32
    return %c0_i32, %c0_i32_0 : i32, i32
  }
  func.func @transform_6(%arg0: i32) -> (i32, i32) {
    %c0_i32 = arith.constant 0 : i32
    %c0_i32_0 = arith.constant 0 : i32
    %c0_i32_1 = arith.constant 0 : i32
    return %c0_i32, %c0_i32_0 : i32, i32
  }
  func.func @transform_7(%arg0: i32) -> (i32, i32) {
    %c0_i32 = arith.constant 0 : i32
    %c0_i32_0 = arith.constant 0 : i32
    %c0_i32_1 = arith.constant 0 : i32
    return %c0_i32, %c0_i32_0 : i32, i32
  }
  func.func @transform_8(%arg0: i32) -> (i32, i32) {
    %c0_i32 = arith.constant 0 : i32
    %c0_i32_0 = arith.constant 0 : i32
    %c0_i32_1 = arith.constant 0 : i32
    return %c0_i32, %c0_i32_0 : i32, i32
  }
  func.func @transform_9(%arg0: i32) -> (i32, i32) {
    %c0_i32 = arith.constant 0 : i32
    %c0_i32_0 = arith.constant 0 : i32
    %c0_i32_1 = arith.constant 0 : i32
    return %c0_i32, %c0_i32_0 : i32, i32
  }
  func.func @transform_10(%arg0: i32) -> (i32, i32) {
    %c0_i32 = arith.constant 0 : i32
    %c0_i32_0 = arith.constant 0 : i32
    %c0_i32_1 = arith.constant 0 : i32
    return %c0_i32, %c0_i32_0 : i32, i32
  }
  func.func @transform_11(%arg0: i32) -> (i32, i32, i32) {
    %c0_i32 = arith.constant 0 : i32
    %c0_i32_0 = arith.constant 0 : i32
    %c0_i32_1 = arith.constant 0 : i32
    return %arg0, %c0_i32, %c0_i32_0 : i32, i32, i32
  }
}

</mosaic_0001>

<llo_original>
// kernel: tpu_custom_call.1
$region0: #{tpu_custom_call.1}
  #allocation0 [shape = 'u32[]', space=smem, size = 0x4, offset = 0x4, fixed_abs, tag = 'smem constant byte address 0x4 - core index']
  #allocation1 [shape = 'u32[144,128]{1,0:T(1,128)}', space=vmem, size = 0x12000, scoped, tag = 'internal scratch']
  %s0 = inlined_call_operand.hbm [shape: f32[2,16,64], index: 0, kind: input, shape index: {}]
  %s1 = inlined_call_operand.vmem [shape: f32[1,64], index: 1, kind: input, shape index: {}]
  %s2 = inlined_call_operand.vmem [shape: f32[1,64], index: 2, kind: input, shape index: {}]
  %s3 = inlined_call_operand.vmem [shape: f32[1,64], index: 3, kind: input, shape index: {}]
  %s4 = inlined_call_operand.vmem [shape: f32[1,64], index: 4, kind: input, shape index: {}]
  %s5 = inlined_call_operand.hbm [shape: bf16[192,128], index: 5, kind: input, shape index: {}]
  %s6 = inlined_call_operand.vmem [shape: f32[1,128], index: 6, kind: input, shape index: {}]
  %s7 = inlined_call_operand.vmem [shape: f32[1,128], index: 7, kind: input, shape index: {}]
  %s8 = inlined_call_operand.vmem [shape: f32[1,128], index: 8, kind: input, shape index: {}]
  %s9 = inlined_call_operand.hbm [shape: bf16[448,128], index: 9, kind: input, shape index: {}]
  %s10 = inlined_call_operand.vmem [shape: f32[1,128], index: 10, kind: input, shape index: {}]
  %s11 = inlined_call_operand.hbm [shape: f32[2,16,128], index: 11, kind: output, shape index: {}]
  %s12 = sld [smem:[#allocation0]]
  $region66: #{tpu_custom_call.1} parent=0
    _
  %s14 = ssub.s32 1, %s12
  %s15 = scalar_select 0, %s14, %s12
  $region1: #{tpu_custom_call.1} parent=0
    #allocation2 [shape = 'u8[16384]{0}', space=vmem, size = 0x4000, scoped, tag = 'input window, operand 0, single buffered']
    #allocation3 [shape = 's32[1]{0}', space=sflag, size = 0x4, scoped, tag = 'scoped memory for tpu_custom_call.1']
    #allocation4 [shape = 's32[1]{0}', space=sflag, size = 0x4, scoped, tag = 'scoped memory for tpu_custom_call.1']
    #allocation5 [shape = 'u8[49152]{0}', space=vmem, size = 0xc000, scoped, tag = 'input window, operand 5, single buffered']
    #allocation6 [shape = 's32[1]{0}', space=sflag, size = 0x4, scoped, tag = 'scoped memory for tpu_custom_call.1']
    #allocation7 [shape = 'u8[114688]{0}', space=vmem, size = 0x1c000, scoped, tag = 'input window, operand 9, single buffered']
    #allocation8 [shape = 'u8[16384]{0}', space=vmem, size = 0x4000, scoped, tag = 'output window, operand 0, single buffered']
    %16 = vsyncpa [#allocation3], 0
    %17 = vsyncpa [#allocation6], 0
    %18 = vsyncpa [#allocation4], 0
    // Predicated region
    $region2: #{tpu_custom_call.1} parent=1 // pred_check
      _
    $region3: #{tpu_custom_call.1} parent=1 // pred_check_branch
      %20 = sbr.rel (0) target = $region5
    $region4: #{tpu_custom_call.1} parent=1 // pred_region
      %s22 = ssub.s32 512, 512
      %23 = vsyncadd [#allocation3], %s22
      %s24 = sshll.u32 [#allocation2], 4
      %s25 = int_to_ptr.vmem [resolvable:$true] %s24
      %30 = dma.hbm_to_vmem [thread:$0]  %s0, 512, %s25, [#allocation3], 128, 128, 8
    $region5: #{tpu_custom_call.1} parent=1 // pred_fallthru
      _
    // Predicated region
    $region6: #{tpu_custom_call.1} parent=1 // pred_check
      _
    $region7: #{tpu_custom_call.1} parent=1 // pred_check_branch
      %32 = sbr.rel (0) target = $region9
    $region8: #{tpu_custom_call.1} parent=1 // pred_region
      _
    $region9: #{tpu_custom_call.1} parent=1 // pred_fallthru
      _
    // Predicated region
    $region10: #{tpu_custom_call.1} parent=1 // pred_check
      _
    $region11: #{tpu_custom_call.1} parent=1 // pred_check_branch
      %34 = sbr.rel (0) target = $region13
    $region12: #{tpu_custom_call.1} parent=1 // pred_region
      _
    $region13: #{tpu_custom_call.1} parent=1 // pred_fallthru
      _
    // Predicated region
    $region14: #{tpu_custom_call.1} parent=1 // pred_check
      _
    $region15: #{tpu_custom_call.1} parent=1 // pred_check_branch
      %36 = sbr.rel (0) target = $region17
    $region16: #{tpu_custom_call.1} parent=1 // pred_region
      _
    $region17: #{tpu_custom_call.1} parent=1 // pred_fallthru
      _
    // Predicated region
    $region18: #{tpu_custom_call.1} parent=1 // pred_check
      _
    $region19: #{tpu_custom_call.1} parent=1 // pred_check_branch
      %38 = sbr.rel (0) target = $region21
    $region20: #{tpu_custom_call.1} parent=1 // pred_region
      _
    $region21: #{tpu_custom_call.1} parent=1 // pred_fallthru
      _
    // Predicated region
    $region22: #{tpu_custom_call.1} parent=1 // pred_check
      _
    $region23: #{tpu_custom_call.1} parent=1 // pred_check_branch
      %40 = sbr.rel (0) target = $region25
    $region24: #{tpu_custom_call.1} parent=1 // pred_region
      %s42 = ssub.s32 1536, 1536
      %43 = vsyncadd [#allocation6], %s42
      %s44 = sshll.u32 [#allocation5], 4
      %s45 = int_to_ptr.vmem [resolvable:$true] %s44
      %50 = dma.hbm_to_vmem [thread:$0]  %s5, 1536, %s45, [#allocation6], 64, 64, 4
    $region25: #{tpu_custom_call.1} parent=1 // pred_fallthru
      _
    // Predicated region
    $region26: #{tpu_custom_call.1} parent=1 // pred_check
      _
    $region27: #{tpu_custom_call.1} parent=1 // pred_check_branch
      %52 = sbr.rel (0) target = $region29
    $region28: #{tpu_custom_call.1} parent=1 // pred_region
      _
    $region29: #{tpu_custom_call.1} parent=1 // pred_fallthru
      _
    // Predicated region
    $region30: #{tpu_custom_call.1} parent=1 // pred_check
      _
    $region31: #{tpu_custom_call.1} parent=1 // pred_check_branch
      %54 = sbr.rel (0) target = $region33
    $region32: #{tpu_custom_call.1} parent=1 // pred_region
      _
    $region33: #{tpu_custom_call.1} parent=1 // pred_fallthru
      _
    // Predicated region
    $region34: #{tpu_custom_call.1} parent=1 // pred_check
      _
    $region35: #{tpu_custom_call.1} parent=1 // pred_check_branch
      %56 = sbr.rel (0) target = $region37
    $region36: #{tpu_custom_call.1} parent=1 // pred_region
      _
    $region37: #{tpu_custom_call.1} parent=1 // pred_fallthru
      _
    // Predicated region
    $region38: #{tpu_custom_call.1} parent=1 // pred_check
      _
    $region39: #{tpu_custom_call.1} parent=1 // pred_check_branch
      %58 = sbr.rel (0) target = $region41
    $region40: #{tpu_custom_call.1} parent=1 // pred_region
      %s60 = ssub.s32 3584, 3584
      %61 = vsyncadd [#allocation6], %s60
      %s62 = sshll.u32 [#allocation7], 4
      %s63 = int_to_ptr.vmem [resolvable:$true] %s62
      %68 = dma.hbm_to_vmem [thread:$0]  %s9, 3584, %s63, [#allocation6], 64, 64, 4
    $region41: #{tpu_custom_call.1} parent=1 // pred_fallthru
      _
    // Predicated region
    $region42: #{tpu_custom_call.1} parent=1 // pred_check
      _
    $region43: #{tpu_custom_call.1} parent=1 // pred_check_branch
      %70 = sbr.rel (0) target = $region45
    $region44: #{tpu_custom_call.1} parent=1 // pred_region
      _
    $region45: #{tpu_custom_call.1} parent=1 // pred_fallthru
      _
    // Predicated region
    $region46: #{tpu_custom_call.1} parent=1 // pred_check
      _
    $region47: #{tpu_custom_call.1} parent=1 // pred_check_branch
      %72 = sbr.rel (0) target = $region49
    $region48: #{tpu_custom_call.1} parent=1 // pred_region
      %73 = dma.done [#allocation3], 512
    $region49: #{tpu_custom_call.1} parent=1 // pred_fallthru
      _
    // Predicated region
    $region50: #{tpu_custom_call.1} parent=1 // pred_check
      _
    $region51: #{tpu_custom_call.1} parent=1 // pred_check_branch
      %75 = sbr.rel (0) target = $region53
    $region52: #{tpu_custom_call.1} parent=1 // pred_region
      %76 = dma.done [#allocation6], 1536
    $region53: #{tpu_custom_call.1} parent=1 // pred_fallthru
      _
    // Predicated region
    $region54: #{tpu_custom_call.1} parent=1 // pred_check
      _
    $region55: #{tpu_custom_call.1} parent=1 // pred_check_branch
      %78 = sbr.rel (0) target = $region57
    $region56: #{tpu_custom_call.1} parent=1 // pred_region
      %79 = dma.done [#allocation6], 3584
    $region57: #{tpu_custom_call.1} parent=1 // pred_fallthru
      _
    %v81 = vld [vmem:[#allocation2] sm:$0xff]
    %v82 = vld [vmem:[#allocation2 + $0x8] sm:$0xff]
    %v83 = vld [vmem:[#allocation2 + $0x10] sm:$0xff]
    %v84 = vld [vmem:[#allocation2 + $0x18] sm:$0xff]
    %vm85 = vcmask 523264
    %v86 = vsel %vm85, %v81, 0.0
    %v87 = vsel %vm85, %v82, 0.0
    %v88 = vadd.f32 %v86, %v87
    %v89 = vrot.slane %v88, 4
    %v90 = vadd.f32 %v88, %v89
    %v91 = vrot.slane %v90, 2
    %v92 = vadd.f32 %v90, %v91
    %v93 = vrot.slane %v92, 1
    %v94 = vadd.f32 %v92, %v93
    %v95 = vsel %vm85, %v83, 0.0
    %v96 = vsel %vm85, %v84, 0.0
    %v97 = vadd.f32 %v95, %v96
    %v98 = vrot.slane %v97, 4
    %v99 = vadd.f32 %v97, %v98
    %v100 = vrot.slane %v99, 2
    %v101 = vadd.f32 %v99, %v100
    %v102 = vrot.slane %v101, 1
    %v103 = vadd.f32 %v101, %v102
    %v104 = vmul.f32 %v81, %v81
    %v105 = vmul.f32 %v82, %v82
    %v106 = vmul.f32 %v83, %v83
    %v107 = vmul.f32 %v84, %v84
    %v108 = vsel %vm85, %v104, 0.0
    %v109 = vsel %vm85, %v105, 0.0
    %v110 = vadd.f32 %v108, %v109
    %v111 = vrot.slane %v110, 4
    %v112 = vadd.f32 %v110, %v111
    %v113 = vrot.slane %v112, 2
    %v114 = vadd.f32 %v112, %v113
    %v115 = vrot.slane %v114, 1
    %v116 = vadd.f32 %v114, %v115
    %v117 = vsel %vm85, %v106, 0.0
    %v118 = vsel %vm85, %v107, 0.0
    %v119 = vadd.f32 %v117, %v118
    %v120 = vrot.slane %v119, 4
    %v121 = vadd.f32 %v119, %v120
    %v122 = vrot.slane %v121, 2
    %v123 = vadd.f32 %v121, %v122
    %v124 = vrot.slane %v123, 1
    %v125 = vadd.f32 %v123, %v124
    %128 = vrot.lane.b32.xlu0 %v94, 124
    %v129 = vpop.permute.xlu0 %128
    %130 = vrot.lane.b32.xlu0 %v103, 124
    %v131 = vpop.permute.xlu0 %130
    %132 = vrot.lane.b32.xlu0 %v94, 120
    %v133 = vpop.permute.xlu0 %132
    %134 = vrot.lane.b32.xlu0 %v103, 120
    %v135 = vpop.permute.xlu0 %134
    %136 = vrot.lane.b32.xlu0 %v94, 116
    %v137 = vpop.permute.xlu0 %136
    %138 = vrot.lane.b32.xlu0 %v103, 116
    %v139 = vpop.permute.xlu0 %138
    %140 = vrot.lane.b32.xlu0 %v94, 112
    %v141 = vpop.permute.xlu0 %140
    %142 = vrot.lane.b32.xlu0 %v103, 112
    %v143 = vpop.permute.xlu0 %142
    %144 = vrot.lane.b32.xlu0 %v94, 108
    %v145 = vpop.permute.xlu0 %144
    %146 = vrot.lane.b32.xlu0 %v103, 108
    %v147 = vpop.permute.xlu0 %146
    %148 = vrot.lane.b32.xlu0 %v94, 104
    %v149 = vpop.permute.xlu0 %148
    %150 = vrot.lane.b32.xlu0 %v103, 104
    %v151 = vpop.permute.xlu0 %150
    %152 = vrot.lane.b32.xlu0 %v94, 100
    %v153 = vpop.permute.xlu0 %152
    %154 = vrot.lane.b32.xlu0 %v103, 100
    %v155 = vpop.permute.xlu0 %154
    %156 = vrot.lane.b32.xlu0 %v94, 96
    %v157 = vpop.permute.xlu0 %156
    %158 = vrot.lane.b32.xlu0 %v103, 96
    %v159 = vpop.permute.xlu0 %158
    %160 = vrot.lane.b32.xlu0 %v94, 92
    %v161 = vpop.permute.xlu0 %160
    %162 = vrot.lane.b32.xlu0 %v103, 92
    %v163 = vpop.permute.xlu0 %162
    %164 = vrot.lane.b32.xlu0 %v94, 88
    %v165 = vpop.permute.xlu0 %164
    %166 = vrot.lane.b32.xlu0 %v103, 88
    %v167 = vpop.permute.xlu0 %166
    %168 = vrot.lane.b32.xlu0 %v94, 84
    %v169 = vpop.permute.xlu0 %168
    %170 = vrot.lane.b32.xlu0 %v103, 84
    %v171 = vpop.permute.xlu0 %170
    %172 = vrot.lane.b32.xlu0 %v94, 80
    %v173 = vpop.permute.xlu0 %172
    %174 = vrot.lane.b32.xlu0 %v103, 80
    %v175 = vpop.permute.xlu0 %174
    %176 = vrot.lane.b32.xlu0 %v94, 76
    %v177 = vpop.permute.xlu0 %176
    %178 = vrot.lane.b32.xlu0 %v103, 76
    %v179 = vpop.permute.xlu0 %178
    %180 = vrot.lane.b32.xlu0 %v94, 72
    %v181 = vpop.permute.xlu0 %180
    %182 = vrot.lane.b32.xlu0 %v103, 72
    %v183 = vpop.permute.xlu0 %182
    %184 = vrot.lane.b32.xlu0 %v94, 68
    %v185 = vpop.permute.xlu0 %184
    %186 = vrot.lane.b32.xlu0 %v103, 68
    %v187 = vpop.permute.xlu0 %186
    %v188 = vrot.slane %v103, 7
    %vm189 = vcmask 1041409
    %v190 = vsel %vm189, %v188, %v94
    %v191 = vrot.slane %v131, 7
    %v192 = vsel %vm189, %v191, %v129
    %v193 = vrot.slane %v135, 7
    %v194 = vsel %vm189, %v193, %v133
    %v195 = vrot.slane %v139, 7
    %v196 = vsel %vm189, %v195, %v137
    %v197 = vrot.slane %v143, 7
    %v198 = vsel %vm189, %v197, %v141
    %v199 = vrot.slane %v147, 7
    %v200 = vsel %vm189, %v199, %v145
    %v201 = vrot.slane %v151, 7
    %v202 = vsel %vm189, %v201, %v149
    %v203 = vrot.slane %v155, 7
    %v204 = vsel %vm189, %v203, %v153
    %v205 = vrot.slane %v159, 7
    %v206 = vsel %vm189, %v205, %v157
    %v207 = vrot.slane %v163, 7
    %v208 = vsel %vm189, %v207, %v161
    %v209 = vrot.slane %v167, 7
    %v210 = vsel %vm189, %v209, %v165
    %v211 = vrot.slane %v171, 7
    %v212 = vsel %vm189, %v211, %v169
    %v213 = vrot.slane %v175, 7
    %v214 = vsel %vm189, %v213, %v173
    %v215 = vrot.slane %v179, 7
    %v216 = vsel %vm189, %v215, %v177
    %v217 = vrot.slane %v183, 7
    %v218 = vsel %vm189, %v217, %v181
    %v219 = vrot.slane %v187, 7
    %v220 = vsel %vm189, %v219, %v185
    %v237 = vcombine.low %v190, %v194
    %v239 = vunpack.c.l.s4 1983009808
    %v240 = vunpack.c.0.s8 %v239
    %v241 = vlaneseq
    %v242 = vshrl.u32 %v241, 7
    %v243 = vsub.s32 %v240, %v242
    %v244 = vrot.slane %v237, %v243
    %v245 = vcombine.low %v192, %v196
    %v247 = vunpack.c.l.s4 1983009808
    %v248 = vunpack.c.0.s8 %v247
    %v249 = vlaneseq
    %v250 = vshrl.u32 %v249, 7
    %v251 = vsub.s32 %v248, %v250
    %v252 = vrot.slane %v245, %v251
    %v253 = vcombine.low %v198, %v202
    %v255 = vunpack.c.l.s4 1983009808
    %v256 = vunpack.c.0.s8 %v255
    %v257 = vlaneseq
    %v258 = vshrl.u32 %v257, 7
    %v259 = vsub.s32 %v256, %v258
    %v260 = vrot.slane %v253, %v259
    %v261 = vcombine.low %v200, %v204
    %v263 = vunpack.c.l.s4 1983009808
    %v264 = vunpack.c.0.s8 %v263
    %v265 = vlaneseq
    %v266 = vshrl.u32 %v265, 7
    %v267 = vsub.s32 %v264, %v266
    %v268 = vrot.slane %v261, %v267
    %v269 = vcombine.low %v244, %v252
    %v271 = vunpack.c.l.s4 1934713408
    %v272 = vunpack.c.0.s8 %v271
    %v273 = vlaneseq
    %v274 = vshrl.u32 %v273, 7
    %v275 = vsub.s32 %v272, %v274
    %v276 = vrot.slane %v269, %v275
    %v277 = vcombine.low %v260, %v268
    %v279 = vunpack.c.l.s4 1934713408
    %v280 = vunpack.c.0.s8 %v279
    %v281 = vlaneseq
    %v282 = vshrl.u32 %v281, 7
    %v283 = vsub.s32 %v280, %v282
    %v284 = vrot.slane %v277, %v283
    %v285 = vcombine.low %v276, %v284
    %v286 = vcombine.high %v276, %v284
    %v287 = vcombine.low %v206, %v210
    %v289 = vunpack.c.l.s4 1983009808
    %v290 = vunpack.c.0.s8 %v289
    %v291 = vlaneseq
    %v292 = vshrl.u32 %v291, 7
    %v293 = vsub.s32 %v290, %v292
    %v294 = vrot.slane %v287, %v293
    %v295 = vcombine.low %v208, %v212
    %v297 = vunpack.c.l.s4 1983009808
    %v298 = vunpack.c.0.s8 %v297
    %v299 = vlaneseq
    %v300 = vshrl.u32 %v299, 7
    %v301 = vsub.s32 %v298, %v300
    %v302 = vrot.slane %v295, %v301
    %v303 = vcombine.low %v214, %v218
    %v305 = vunpack.c.l.s4 1983009808
    %v306 = vunpack.c.0.s8 %v305
    %v307 = vlaneseq
    %v308 = vshrl.u32 %v307, 7
    %v309 = vsub.s32 %v306, %v308
    %v310 = vrot.slane %v303, %v309
    %v311 = vcombine.low %v216, %v220
    %v313 = vunpack.c.l.s4 1983009808
    %v314 = vunpack.c.0.s8 %v313
    %v315 = vlaneseq
    %v316 = vshrl.u32 %v315, 7
    %v317 = vsub.s32 %v314, %v316
    %v318 = vrot.slane %v311, %v317
    %v319 = vcombine.low %v294, %v302
    %v321 = vunpack.c.l.s4 1934713408
    %v322 = vunpack.c.0.s8 %v321
    %v323 = vlaneseq
    %v324 = vshrl.u32 %v323, 7
    %v325 = vsub.s32 %v322, %v324
    %v326 = vrot.slane %v319, %v325
    %v327 = vcombine.low %v310, %v318
    %v329 = vunpack.c.l.s4 1934713408
    %v330 = vunpack.c.0.s8 %v329
    %v331 = vlaneseq
    %v332 = vshrl.u32 %v331, 7
    %v333 = vsub.s32 %v330, %v332
    %v334 = vrot.slane %v327, %v333
    %v335 = vcombine.low %v326, %v334
    %v336 = vcombine.high %v326, %v334
    %vm337 = vcmask 31744
    %v338 = vsel %vm337, %v285, 0.0
    %v339 = vsel %vm337, %v335, 0.0
    %v340 = vadd.f32 %v338, %v339
    %v341 = vrot.slane %v340, 4
    %v342 = vadd.f32 %v340, %v341
    %v343 = vrot.slane %v342, 2
    %v344 = vadd.f32 %v342, %v343
    %v345 = vrot.slane %v344, 1
    %v346 = vadd.f32 %v344, %v345
    %v347 = vsel %vm337, %v286, 0.0
    %v348 = vsel %vm337, %v336, 0.0
    %v349 = vadd.f32 %v347, %v348
    %v350 = vrot.slane %v349, 4
    %v351 = vadd.f32 %v349, %v350
    %v352 = vrot.slane %v351, 2
    %v353 = vadd.f32 %v351, %v352
    %v354 = vrot.slane %v353, 1
    %v355 = vadd.f32 %v353, %v354
    %358 = vrot.lane.b32.xlu0 %v116, 124
    %v359 = vpop.permute.xlu0 %358
    %360 = vrot.lane.b32.xlu0 %v125, 124
    %v361 = vpop.permute.xlu0 %360
    %362 = vrot.lane.b32.xlu0 %v116, 120
    %v363 = vpop.permute.xlu0 %362
    %364 = vrot.lane.b32.xlu0 %v125, 120
    %v365 = vpop.permute.xlu0 %364
    %366 = vrot.lane.b32.xlu0 %v116, 116
    %v367 = vpop.permute.xlu0 %366
    %368 = vrot.lane.b32.xlu0 %v125, 116
    %v369 = vpop.permute.xlu0 %368
    %370 = vrot.lane.b32.xlu0 %v116, 112
    %v371 = vpop.permute.xlu0 %370
    %372 = vrot.lane.b32.xlu0 %v125, 112
    %v373 = vpop.permute.xlu0 %372
    %374 = vrot.lane.b32.xlu0 %v116, 108
    %v375 = vpop.permute.xlu0 %374
    %376 = vrot.lane.b32.xlu0 %v125, 108
    %v377 = vpop.permute.xlu0 %376
    %378 = vrot.lane.b32.xlu0 %v116, 104
    %v379 = vpop.permute.xlu0 %378
    %380 = vrot.lane.b32.xlu0 %v125, 104
    %v381 = vpop.permute.xlu0 %380
    %382 = vrot.lane.b32.xlu0 %v116, 100
    %v383 = vpop.permute.xlu0 %382
    %384 = vrot.lane.b32.xlu0 %v125, 100
    %v385 = vpop.permute.xlu0 %384
    %386 = vrot.lane.b32.xlu0 %v116, 96
    %v387 = vpop.permute.xlu0 %386
    %388 = vrot.lane.b32.xlu0 %v125, 96
    %v389 = vpop.permute.xlu0 %388
    %390 = vrot.lane.b32.xlu0 %v116, 92
    %v391 = vpop.permute.xlu0 %390
    %392 = vrot.lane.b32.xlu0 %v125, 92
    %v393 = vpop.permute.xlu0 %392
    %394 = vrot.lane.b32.xlu0 %v116, 88
    %v395 = vpop.permute.xlu0 %394
    %396 = vrot.lane.b32.xlu0 %v125, 88
    %v397 = vpop.permute.xlu0 %396
    %398 = vrot.lane.b32.xlu0 %v116, 84
    %v399 = vpop.permute.xlu0 %398
    %400 = vrot.lane.b32.xlu0 %v125, 84
    %v401 = vpop.permute.xlu0 %400
    %402 = vrot.lane.b32.xlu0 %v116, 80
    %v403 = vpop.permute.xlu0 %402
    %404 = vrot.lane.b32.xlu0 %v125, 80
    %v405 = vpop.permute.xlu0 %404
    %406 = vrot.lane.b32.xlu0 %v116, 76
    %v407 = vpop.permute.xlu0 %406
    %408 = vrot.lane.b32.xlu0 %v125, 76
    %v409 = vpop.permute.xlu0 %408
    %410 = vrot.lane.b32.xlu0 %v116, 72
    %v411 = vpop.permute.xlu0 %410
    %412 = vrot.lane.b32.xlu0 %v125, 72
    %v413 = vpop.permute.xlu0 %412
    %414 = vrot.lane.b32.xlu0 %v116, 68
    %v415 = vpop.permute.xlu0 %414
    %416 = vrot.lane.b32.xlu0 %v125, 68
    %v417 = vpop.permute.xlu0 %416
    %v418 = vrot.slane %v125, 7
    %v419 = vsel %vm189, %v418, %v116
    %v420 = vrot.slane %v361, 7
    %v421 = vsel %vm189, %v420, %v359
    %v422 = vrot.slane %v365, 7
    %v423 = vsel %vm189, %v422, %v363
    %v424 = vrot.slane %v369, 7
    %v425 = vsel %vm189, %v424, %v367
    %v426 = vrot.slane %v373, 7
    %v427 = vsel %vm189, %v426, %v371
    %v428 = vrot.slane %v377, 7
    %v429 = vsel %vm189, %v428, %v375
    %v430 = vrot.slane %v381, 7
    %v431 = vsel %vm189, %v430, %v379
    %v432 = vrot.slane %v385, 7
    %v433 = vsel %vm189, %v432, %v383
    %v434 = vrot.slane %v389, 7
    %v435 = vsel %vm189, %v434, %v387
    %v436 = vrot.slane %v393, 7
    %v437 = vsel %vm189, %v436, %v391
    %v438 = vrot.slane %v397, 7
    %v439 = vsel %vm189, %v438, %v395
    %v440 = vrot.slane %v401, 7
    %v441 = vsel %vm189, %v440, %v399
    %v442 = vrot.slane %v405, 7
    %v443 = vsel %vm189, %v442, %v403
    %v444 = vrot.slane %v409, 7
    %v445 = vsel %vm189, %v444, %v407
    %v446 = vrot.slane %v413, 7
    %v447 = vsel %vm189, %v446, %v411
    %v448 = vrot.slane %v417, 7
    %v449 = vsel %vm189, %v448, %v415
    %v466 = vcombine.low %v419, %v423
    %v468 = vunpack.c.l.s4 1983009808
    %v469 = vunpack.c.0.s8 %v468
    %v470 = vlaneseq
    %v471 = vshrl.u32 %v470, 7
    %v472 = vsub.s32 %v469, %v471
    %v473 = vrot.slane %v466, %v472
    %v474 = vcombine.low %v421, %v425
    %v476 = vunpack.c.l.s4 1983009808
    %v477 = vunpack.c.0.s8 %v476
    %v478 = vlaneseq
    %v479 = vshrl.u32 %v478, 7
    %v480 = vsub.s32 %v477, %v479
    %v481 = vrot.slane %v474, %v480
    %v482 = vcombine.low %v427, %v431
    %v484 = vunpack.c.l.s4 1983009808
    %v485 = vunpack.c.0.s8 %v484
    %v486 = vlaneseq
    %v487 = vshrl.u32 %v486, 7
    %v488 = vsub.s32 %v485, %v487
    %v489 = vrot.slane %v482, %v488
    %v490 = vcombine.low %v429, %v433
    %v492 = vunpack.c.l.s4 1983009808
    %v493 = vunpack.c.0.s8 %v492
    %v494 = vlaneseq
    %v495 = vshrl.u32 %v494, 7
    %v496 = vsub.s32 %v493, %v495
    %v497 = vrot.slane %v490, %v496
    %v498 = vcombine.low %v473, %v481
    %v500 = vunpack.c.l.s4 1934713408
    %v501 = vunpack.c.0.s8 %v500
    %v502 = vlaneseq
    %v503 = vshrl.u32 %v502, 7
    %v504 = vsub.s32 %v501, %v503
    %v505 = vrot.slane %v498, %v504
    %v506 = vcombine.low %v489, %v497
    %v508 = vunpack.c.l.s4 1934713408
    %v509 = vunpack.c.0.s8 %v508
    %v510 = vlaneseq
    %v511 = vshrl.u32 %v510, 7
    %v512 = vsub.s32 %v509, %v511
    %v513 = vrot.slane %v506, %v512
    %v514 = vcombine.low %v505, %v513
    %v515 = vcombine.high %v505, %v513
    %v516 = vcombine.low %v435, %v439
    %v518 = vunpack.c.l.s4 1983009808
    %v519 = vunpack.c.0.s8 %v518
    %v520 = vlaneseq
    %v521 = vshrl.u32 %v520, 7
    %v522 = vsub.s32 %v519, %v521
    %v523 = vrot.slane %v516, %v522
    %v524 = vcombine.low %v437, %v441
    %v526 = vunpack.c.l.s4 1983009808
    %v527 = vunpack.c.0.s8 %v526
    %v528 = vlaneseq
    %v529 = vshrl.u32 %v528, 7
    %v530 = vsub.s32 %v527, %v529
    %v531 = vrot.slane %v524, %v530
    %v532 = vcombine.low %v443, %v447
    %v534 = vunpack.c.l.s4 1983009808
    %v535 = vunpack.c.0.s8 %v534
    %v536 = vlaneseq
    %v537 = vshrl.u32 %v536, 7
    %v538 = vsub.s32 %v535, %v537
    %v539 = vrot.slane %v532, %v538
    %v540 = vcombine.low %v445, %v449
    %v542 = vunpack.c.l.s4 1983009808
    %v543 = vunpack.c.0.s8 %v542
    %v544 = vlaneseq
    %v545 = vshrl.u32 %v544, 7
    %v546 = vsub.s32 %v543, %v545
    %v547 = vrot.slane %v540, %v546
    %v548 = vcombine.low %v523, %v531
    %v550 = vunpack.c.l.s4 1934713408
    %v551 = vunpack.c.0.s8 %v550
    %v552 = vlaneseq
    %v553 = vshrl.u32 %v552, 7
    %v554 = vsub.s32 %v551, %v553
    %v555 = vrot.slane %v548, %v554
    %v556 = vcombine.low %v539, %v547
    %v558 = vunpack.c.l.s4 1934713408
    %v559 = vunpack.c.0.s8 %v558
    %v560 = vlaneseq
    %v561 = vshrl.u32 %v560, 7
    %v562 = vsub.s32 %v559, %v561
    %v563 = vrot.slane %v556, %v562
    %v564 = vcombine.low %v555, %v563
    %v565 = vcombine.high %v555, %v563
    %v566 = vsel %vm337, %v514, 0.0
    %v567 = vsel %vm337, %v564, 0.0
    %v568 = vadd.f32 %v566, %v567
    %v569 = vrot.slane %v568, 4
    %v570 = vadd.f32 %v568, %v569
    %v571 = vrot.slane %v570, 2
    %v572 = vadd.f32 %v570, %v571
    %v573 = vrot.slane %v572, 1
    %v574 = vadd.f32 %v572, %v573
    %v575 = vsel %vm337, %v515, 0.0
    %v576 = vsel %vm337, %v565, 0.0
    %v577 = vadd.f32 %v575, %v576
    %v578 = vrot.slane %v577, 4
    %v579 = vadd.f32 %v577, %v578
    %v580 = vrot.slane %v579, 2
    %v581 = vadd.f32 %v579, %v580
    %v582 = vrot.slane %v581, 1
    %v583 = vadd.f32 %v581, %v582
    %v584 = vmul.f32 %v346, 0.00390625
    %v585 = vmul.f32 %v355, 0.00390625
    %v586 = vmul.f32 %v574, 0.00390625
    %v587 = vmul.f32 %v583, 0.00390625
    %v588 = vmul.f32 %v584, %v584
    %v589 = vmul.f32 %v585, %v585
    %v590 = vsub.f32 %v586, %v588
    %v591 = vsub.f32 %v587, %v589
    %v592 = vmax.f32 %v590, 0.0
    %v593 = vmax.f32 %v591, 0.0
    %v594 = vadd.f32 %v592, 1e-05
    %v595 = vadd.f32 %v593, 1e-05
    %v596 = vrsqrt.pop %v594
    %v597 = vrsqrt.pop %v595
    %v600 = vsel %vm189, %v585, %v584
    %602 = vrot.lane.b32.xlu0 %v600, 4
    %v603 = vpop.permute.xlu0 %602
    %605 = vrot.lane.b32.xlu0 %v600, 8
    %v606 = vpop.permute.xlu0 %605
    %608 = vrot.lane.b32.xlu0 %v600, 12
    %v609 = vpop.permute.xlu0 %608
    %611 = vrot.lane.b32.xlu0 %v600, 16
    %v612 = vpop.permute.xlu0 %611
    %614 = vrot.lane.b32.xlu0 %v600, 20
    %v615 = vpop.permute.xlu0 %614
    %617 = vrot.lane.b32.xlu0 %v600, 24
    %v618 = vpop.permute.xlu0 %617
    %620 = vrot.lane.b32.xlu0 %v600, 28
    %v621 = vpop.permute.xlu0 %620
    %623 = vrot.lane.b32.xlu0 %v600, 32
    %v624 = vpop.permute.xlu0 %623
    %626 = vrot.lane.b32.xlu0 %v600, 36
    %v627 = vpop.permute.xlu0 %626
    %629 = vrot.lane.b32.xlu0 %v600, 40
    %v630 = vpop.permute.xlu0 %629
    %632 = vrot.lane.b32.xlu0 %v600, 44
    %v633 = vpop.permute.xlu0 %632
    %635 = vrot.lane.b32.xlu0 %v600, 48
    %v636 = vpop.permute.xlu0 %635
    %638 = vrot.lane.b32.xlu0 %v600, 52
    %v639 = vpop.permute.xlu0 %638
    %641 = vrot.lane.b32.xlu0 %v600, 56
    %v642 = vpop.permute.xlu0 %641
    %644 = vrot.lane.b32.xlu0 %v600, 60
    %v645 = vpop.permute.xlu0 %644
    %v647 = vsel %vm337, %v600, %v603
    %vm648 = vcmask 64512
    %v649 = vsel %vm648, %v647, %v606
    %vm650 = vcmask 97280
    %v651 = vsel %vm650, %v649, %v609
    %vm652 = vcmask 130048
    %v653 = vsel %vm652, %v651, %v612
    %vm654 = vcmask 162816
    %v655 = vsel %vm654, %v653, %v615
    %vm656 = vcmask 195584
    %v657 = vsel %vm656, %v655, %v618
    %vm658 = vcmask 228352
    %v659 = vsel %vm658, %v657, %v621
    %vm660 = vcmask 261120
    %v661 = vsel %vm660, %v659, %v624
    %vm662 = vcmask 293888
    %v663 = vsel %vm662, %v661, %v627
    %vm664 = vcmask 326656
    %v665 = vsel %vm664, %v663, %v630
    %vm666 = vcmask 359424
    %v667 = vsel %vm666, %v665, %v633
    %vm668 = vcmask 392192
    %v669 = vsel %vm668, %v667, %v636
    %vm670 = vcmask 424960
    %v671 = vsel %vm670, %v669, %v639
    %vm672 = vcmask 457728
    %v673 = vsel %vm672, %v671, %v642
    %vm674 = vcmask 490496
    %v675 = vsel %vm674, %v673, %v645
    %v678 = vunpack.c.l.s4 1966171168
    %v679 = vunpack.c.0.s8 %v678
    %v680 = vlaneseq
    %v681 = vshrl.u32 %v680, 7
    %v682 = vsub.s32 %v679, %v681
    %v683 = vrot.slane %v675, %v682
    %v684 = vcombine.high %v683, %v683
    %v686 = vunpack.c.l.s4 1966171168
    %v687 = vunpack.c.0.s8 %v686
    %v688 = vlaneseq
    %v689 = vshrl.u32 %v688, 7
    %v690 = vsub.s32 %v687, %v689
    %v691 = vrot.slane %v683, %v690
    %v693 = vunpack.c.l.s4 1966171168
    %v694 = vunpack.c.0.s8 %v693
    %v695 = vlaneseq
    %v696 = vshrl.u32 %v695, 7
    %v697 = vsub.s32 %v694, %v696
    %v698 = vrot.slane %v684, %v697
    %v703 = vsel %vm189, %v597, %v596
    %705 = vrot.lane.b32.xlu0 %v703, 4
    %v706 = vpop.permute.xlu0 %705
    %708 = vrot.lane.b32.xlu0 %v703, 8
    %v709 = vpop.permute.xlu0 %708
    %711 = vrot.lane.b32.xlu0 %v703, 12
    %v712 = vpop.permute.xlu0 %711
    %714 = vrot.lane.b32.xlu0 %v703, 16
    %v715 = vpop.permute.xlu0 %714
    %717 = vrot.lane.b32.xlu0 %v703, 20
    %v718 = vpop.permute.xlu0 %717
    %720 = vrot.lane.b32.xlu0 %v703, 24
    %v721 = vpop.permute.xlu0 %720
    %723 = vrot.lane.b32.xlu0 %v703, 28
    %v724 = vpop.permute.xlu0 %723
    %726 = vrot.lane.b32.xlu0 %v703, 32
    %v727 = vpop.permute.xlu0 %726
    %729 = vrot.lane.b32.xlu0 %v703, 36
    %v730 = vpop.permute.xlu0 %729
    %732 = vrot.lane.b32.xlu0 %v703, 40
    %v733 = vpop.permute.xlu0 %732
    %735 = vrot.lane.b32.xlu0 %v703, 44
    %v736 = vpop.permute.xlu0 %735
    %738 = vrot.lane.b32.xlu0 %v703, 48
    %v739 = vpop.permute.xlu0 %738
    %741 = vrot.lane.b32.xlu0 %v703, 52
    %v742 = vpop.permute.xlu0 %741
    %744 = vrot.lane.b32.xlu0 %v703, 56
    %v745 = vpop.permute.xlu0 %744
    %747 = vrot.lane.b32.xlu0 %v703, 60
    %v748 = vpop.permute.xlu0 %747
    %v750 = vsel %vm337, %v703, %v706
    %v751 = vsel %vm648, %v750, %v709
    %v752 = vsel %vm650, %v751, %v712
    %v753 = vsel %vm652, %v752, %v715
    %v754 = vsel %vm654, %v753, %v718
    %v755 = vsel %vm656, %v754, %v721
    %v756 = vsel %vm658, %v755, %v724
    %v757 = vsel %vm660, %v756, %v727
    %v758 = vsel %vm662, %v757, %v730
    %v759 = vsel %vm664, %v758, %v733
    %v760 = vsel %vm666, %v759, %v736
    %v761 = vsel %vm668, %v760, %v739
    %v762 = vsel %vm670, %v761, %v742
    %v763 = vsel %vm672, %v762, %v745
    %v764 = vsel %vm674, %v763, %v748
    %v767 = vunpack.c.l.s4 1966171168
    %v768 = vunpack.c.0.s8 %v767
    %v769 = vlaneseq
    %v770 = vshrl.u32 %v769, 7
    %v771 = vsub.s32 %v768, %v770
    %v772 = vrot.slane %v764, %v771
    %v773 = vcombine.high %v772, %v772
    %v775 = vunpack.c.l.s4 1966171168
    %v776 = vunpack.c.0.s8 %v775
    %v777 = vlaneseq
    %v778 = vshrl.u32 %v777, 7
    %v779 = vsub.s32 %v776, %v778
    %v780 = vrot.slane %v772, %v779
    %v782 = vunpack.c.l.s4 1966171168
    %v783 = vunpack.c.0.s8 %v782
    %v784 = vlaneseq
    %v785 = vshrl.u32 %v784, 7
    %v786 = vsub.s32 %v783, %v785
    %v787 = vrot.slane %v773, %v786
    %v790 = vld [vmem:[%s1] sm:$0x1]
    %v791 = vmul.f32 %v780, %v790
    %v792 = vmul.f32 %v787, %v790
    %v795 = vlaneseq
    %v796 = vshrl.u32 %v795, 7
    %v797 = vsub.s32 0, %v796
    %v798 = vrot.slane %v791, %v797
    %v799 = vlaneseq
    %v800 = vshrl.u32 %v799, 7
    %v801 = vsub.s32 0, %v800
    %v802 = vrot.slane %v792, %v801
    %v805 = vmul.f32 %v81, %v798
    %v806 = vmul.f32 %v82, %v798
    %v807 = vmul.f32 %v83, %v802
    %v808 = vmul.f32 %v84, %v802
    %v809 = vld [vmem:[%s2] sm:$0x1]
    %v810 = vmul.f32 %v691, %v791
    %v811 = vmul.f32 %v698, %v792
    %v812 = vsub.f32 %v809, %v810
    %v813 = vsub.f32 %v809, %v811
    %v816 = vlaneseq
    %v817 = vshrl.u32 %v816, 7
    %v818 = vsub.s32 0, %v817
    %v819 = vrot.slane %v812, %v818
    %v820 = vlaneseq
    %v821 = vshrl.u32 %v820, 7
    %v822 = vsub.s32 0, %v821
    %v823 = vrot.slane %v813, %v822
    %v826 = vadd.f32 %v805, %v819
    %v827 = vadd.f32 %v806, %v819
    %v828 = vadd.f32 %v807, %v823
    %v829 = vadd.f32 %v808, %v823
    %v830 = vmax.f32 %v826, 0.0
    %v831 = vmax.f32 %v827, 0.0
    %v832 = vmax.f32 %v828, 0.0
    %v833 = vmax.f32 %v829, 0.0
    %v834 = vld [vmem:[%s3] sm:$0x1]
    %v835 = vmul.f32 %v780, %v834
    %v836 = vmul.f32 %v787, %v834
    %v839 = vlaneseq
    %v840 = vshrl.u32 %v839, 7
    %v841 = vsub.s32 0, %v840
    %v842 = vrot.slane %v835, %v841
    %v843 = vlaneseq
    %v844 = vshrl.u32 %v843, 7
    %v845 = vsub.s32 0, %v844
    %v846 = vrot.slane %v836, %v845
    %v849 = vmul.f32 %v81, %v842
    %v850 = vmul.f32 %v82, %v842
    %v851 = vmul.f32 %v83, %v846
    %v852 = vmul.f32 %v84, %v846
    %v853 = vld [vmem:[%s4] sm:$0x1]
    %v854 = vmul.f32 %v691, %v835
    %v855 = vmul.f32 %v698, %v836
    %v856 = vsub.f32 %v853, %v854
    %v857 = vsub.f32 %v853, %v855
    %v860 = vlaneseq
    %v861 = vshrl.u32 %v860, 7
    %v862 = vsub.s32 0, %v861
    %v863 = vrot.slane %v856, %v862
    %v864 = vlaneseq
    %v865 = vshrl.u32 %v864, 7
    %v866 = vsub.s32 0, %v865
    %v867 = vrot.slane %v857, %v866
    %v870 = vadd.f32 %v849, %v863
    %v871 = vadd.f32 %v850, %v863
    %v872 = vadd.f32 %v851, %v867
    %v873 = vadd.f32 %v852, %v867
    %v874 = vmax.f32 %v870, 0.0
    %v875 = vmax.f32 %v871, 0.0
    %v876 = vmax.f32 %v872, 0.0
    %v877 = vmax.f32 %v873, 0.0
    %v878 = vrot.slane %v830, 7
    %v879 = vrot.slane %v831, 7
    %v880 = vrot.slane %v832, 7
    %v881 = vrot.slane %v833, 7
    %v882 = vlaneseq
    %v883 = vshrl.u32 %v882, 7
    %vm884 = vcmp.lt.s32.totalorder %v883, 1
    %v885 = vsel %vm884, %v880, %v881
    %v886 = vsel %vm884, %v879, %v880
    %v887 = vsel %vm884, %v878, %v879
    %v888 = vsel %vm884, %v881, %v878
    %v889 = vadd.s32 %v883, 8
    %v890 = vadd.s32 %v883, 16
    %v891 = vadd.s32 %v883, 24
    %vm892 = vcmp.lt.s32.totalorder %v883, 0
    %v893 = vsub.s32 0, %v883
    %v894 = vsel %vm892, %v893, %v883
    %v895 = vshrl.u32 %v894, 4
    %v896 = vand.u32 %v894, 15
    %v897 = vsub.s32 0, %v896
    %v898 = vsel %vm892, %v897, %v896
    %vm899 = vcmp.lt.s32.totalorder %v889, 0
    %v900 = vsub.s32 0, %v889
    %v901 = vsel %vm899, %v900, %v889
    %v902 = vshrl.u32 %v901, 4
    %v903 = vand.u32 %v901, 15
    %v904 = vsub.s32 0, %v903
    %v905 = vsel %vm899, %v904, %v903
    %vm906 = vcmp.lt.s32.totalorder %v890, 0
    %v907 = vsub.s32 0, %v890
    %v908 = vsel %vm906, %v907, %v890
    %v909 = vshrl.u32 %v908, 4
    %v910 = vand.u32 %v908, 15
    %v911 = vsub.s32 0, %v910
    %v912 = vsel %vm906, %v911, %v910
    %vm913 = vcmp.lt.s32.totalorder %v891, 0
    %v914 = vsub.s32 0, %v891
    %v915 = vsel %vm913, %v914, %v891
    %v916 = vshrl.u32 %v915, 4
    %v917 = vand.u32 %v915, 15
    %v918 = vsub.s32 0, %v917
    %v919 = vsel %vm913, %v918, %v917
    %vm920 = vcmp.ne.s32.totalorder %v898, 0
    %vm921 = vcmp.ne.s32.totalorder %v905, 0
    %vm922 = vcmp.ne.s32.totalorder %v912, 0
    %vm923 = vcmp.ne.s32.totalorder %v919, 0
    %vm924 = vcmp.lt.s32.totalorder %v898, 0
    %vm925 = vcmp.lt.s32.totalorder %v905, 0
    %vm926 = vcmp.lt.s32.totalorder %v912, 0
    %vm927 = vcmp.lt.s32.totalorder %v919, 0
    %vm928 = vmand %vm924, %vm920
    %vm929 = vmand %vm925, %vm921
    %vm930 = vmand %vm926, %vm922
    %vm931 = vmand %vm927, %vm923
    %v932 = vadd.s32 %v898, 16
    %v933 = vadd.s32 %v905, 16
    %v934 = vadd.s32 %v912, 16
    %v935 = vadd.s32 %v919, 16
    %v936 = vsel %vm928, %v932, %v898
    %v937 = vsel %vm929, %v933, %v905
    %v938 = vsel %vm930, %v934, %v912
    %v939 = vsel %vm931, %v935, %v919
    %vm940 = vcmp.eq.s32.totalorder %v936, 0
    %vm941 = vcmp.eq.s32.totalorder %v937, 0
    %vm942 = vcmp.eq.s32.totalorder %v938, 0
    %vm943 = vcmp.eq.s32.totalorder %v939, 0
    %v944 = vsel %vm940, 1, 0
    %v945 = vsel %vm941, 1, 0
    %v946 = vsel %vm942, 1, 0
    %v947 = vsel %vm943, 1, 0
    %vm948 = vcmp.eq.s32.totalorder %v944, 1
    %vm949 = vcmp.eq.s32.totalorder %v945, 1
    %vm950 = vcmp.eq.s32.totalorder %v946, 1
    %vm951 = vcmp.eq.s32.totalorder %v947, 1
    %v952 = vsel %vm948, 0.0, %v888
    %v953 = vsel %vm949, 0.0, %v887
    %v954 = vsel %vm950, 0.0, %v886
    %v955 = vsel %vm951, 0.0, %v885
    %v956 = vrot.slane %v830, 1
    %v957 = vrot.slane %v831, 1
    %v958 = vrot.slane %v832, 1
    %v959 = vrot.slane %v833, 1
    %vm960 = vcmp.lt.s32.totalorder %v883, 7
    %v961 = vsel %vm960, %v958, %v959
    %v962 = vsel %vm960, %v957, %v958
    %v963 = vsel %vm960, %v956, %v957
    %v964 = vsel %vm960, %v959, %v956
    %vm965 = vcmp.eq.s32.totalorder %v936, 15
    %vm966 = vcmp.eq.s32.totalorder %v937, 15
    %vm967 = vcmp.eq.s32.totalorder %v938, 15
    %vm968 = vcmp.eq.s32.totalorder %v939, 15
    %v969 = vsel %vm965, 1, 0
    %v970 = vsel %vm966, 1, 0
    %v971 = vsel %vm967, 1, 0
    %v972 = vsel %vm968, 1, 0
    %vm973 = vcmp.eq.s32.totalorder %v969, 1
    %vm974 = vcmp.eq.s32.totalorder %v970, 1
    %vm975 = vcmp.eq.s32.totalorder %v971, 1
    %vm976 = vcmp.eq.s32.totalorder %v972, 1
    %v977 = vsel %vm973, 0.0, %v963
    %v978 = vsel %vm974, 0.0, %v962
    %v979 = vsel %vm975, 0.0, %v961
    %v980 = vsel %vm976, 0.0, %v964
    %985 = vrot.lane.b32.xlu0 %v830, 64
    %v986 = vpop.permute.xlu0 %985
    %987 = vrot.lane.b32.xlu0 %v831, 64
    %v988 = vpop.permute.xlu0 %987
    %989 = vrot.lane.b32.xlu0 %v832, 64
    %v990 = vpop.permute.xlu0 %989
    %991 = vrot.lane.b32.xlu0 %v833, 64
    %v992 = vpop.permute.xlu0 %991
    %v997 = vsel %vm85, %v952, %v986
    %v998 = vsel %vm85, %v953, %v988
    %v999 = vsel %vm85, %v954, %v990
    %v1000 = vsel %vm85, %v955, %v992
    %v1001 = vpack.c.bf16 %v998, %v997
    %v1002 = vpack.c.bf16 %v978, %v977
    %v1003 = vpack.c.bf16 %v1000, %v999
    %v1004 = vpack.c.bf16 %v980, %v979
    %v1005 = vld [vmem:[#allocation5] sm:$0xf]
    %v1006 = vld [vmem:[#allocation5 + $0x4] sm:$0xf]
    %v1007 = vld [vmem:[#allocation5 + $0x8] sm:$0xf]
    %v1008 = vld [vmem:[#allocation5 + $0xc] sm:$0xf]
    %v1009 = vld [vmem:[#allocation5 + $0x10] sm:$0xf]
    %v1010 = vld [vmem:[#allocation5 + $0x14] sm:$0xf]
    %v1011 = vld [vmem:[#allocation5 + $0x18] sm:$0xf]
    %v1012 = vld [vmem:[#allocation5 + $0x1c] sm:$0xf]
    %v1013 = vld [vmem:[#allocation5 + $0x20] sm:$0xf]
    %v1014 = vld [vmem:[#allocation5 + $0x24] sm:$0xf]
    %v1015 = vld [vmem:[#allocation5 + $0x28] sm:$0xf]
    %v1016 = vld [vmem:[#allocation5 + $0x2c] sm:$0xf]
    %v1017 = vld [vmem:[#allocation5 + $0x30] sm:$0xf]
    %v1018 = vld [vmem:[#allocation5 + $0x34] sm:$0xf]
    %v1019 = vld [vmem:[#allocation5 + $0x38] sm:$0xf]
    %v1020 = vld [vmem:[#allocation5 + $0x3c] sm:$0xf]
    %v1021 = vld [vmem:[#allocation5 + $0x40] sm:$0xf]
    %v1022 = vld [vmem:[#allocation5 + $0x44] sm:$0xf]
    %v1023 = vld [vmem:[#allocation5 + $0x48] sm:$0xf]
    %v1024 = vld [vmem:[#allocation5 + $0x4c] sm:$0xf]
    %v1025 = vld [vmem:[#allocation5 + $0x50] sm:$0xf]
    %v1026 = vld [vmem:[#allocation5 + $0x54] sm:$0xf]
    %v1027 = vld [vmem:[#allocation5 + $0x58] sm:$0xf]
    %v1028 = vld [vmem:[#allocation5 + $0x5c] sm:$0xf]
    %v1029 = vld [vmem:[%s6] sm:$0x1]
    %v1031 = vlaneseq
    %v1032 = vshrl.u32 %v1031, 7
    %v1033 = vsub.s32 0, %v1032
    %v1034 = vrot.slane %v1029, %v1033
    %v1060 = vunpack.c.l.b16 %v1005
    %v1061 = vunpack.c.l.b16 %v1006
    %v1062 = vunpack.c.l.b16 %v1007
    %v1063 = vunpack.c.l.b16 %v1008
    %v1064 = vunpack.c.l.b16 %v1009
    %v1065 = vunpack.c.l.b16 %v1010
    %v1066 = vunpack.c.l.b16 %v1011
    %v1067 = vunpack.c.l.b16 %v1012
    %v1068 = vunpack.c.l.b16 %v1013
    %v1069 = vunpack.c.l.b16 %v1014
    %v1070 = vunpack.c.l.b16 %v1015
    %v1071 = vunpack.c.l.b16 %v1016
    %v1072 = vunpack.c.l.b16 %v1017
    %v1073 = vunpack.c.l.b16 %v1018
    %v1074 = vunpack.c.l.b16 %v1019
    %v1075 = vunpack.c.l.b16 %v1020
    %v1076 = vunpack.c.l.b16 %v1021
    %v1077 = vunpack.c.l.b16 %v1022
    %v1078 = vunpack.c.l.b16 %v1023
    %v1079 = vunpack.c.l.b16 %v1024
    %v1080 = vunpack.c.l.b16 %v1025
    %v1081 = vunpack.c.l.b16 %v1026
    %v1082 = vunpack.c.l.b16 %v1027
    %v1083 = vunpack.c.l.b16 %v1028
    %v1084 = vpack.c.b16 %v1061, %v1060
    %v1085 = vpack.c.b16 %v1063, %v1062
    %v1086 = vpack.c.b16 %v1065, %v1064
    %v1087 = vpack.c.b16 %v1067, %v1066
    %v1088 = vpack.c.b16 %v1069, %v1068
    %v1089 = vpack.c.b16 %v1071, %v1070
    %v1090 = vpack.c.b16 %v1073, %v1072
    %v1091 = vpack.c.b16 %v1075, %v1074
    %v1092 = vpack.c.b16 %v1077, %v1076
    %v1093 = vpack.c.b16 %v1079, %v1078
    %v1094 = vpack.c.b16 %v1081, %v1080
    %v1095 = vpack.c.b16 %v1083, %v1082
    %v1109 = vsel %vm85, %v1002, 0
    %v1112 = vsel %vm85, %v1004, 0
    %1114 = vmatprep.subr.bf16.mxu0 0
    %1115 = vmatpush1.bf16.msra.mxu0 %v1091
    %1116 = vmatprep.subr.bf16.mxu0 0
    %1117 = vmatpush1.bf16.msra.mxu0 %v1090
    %1118 = vmatprep.subr.bf16.mxu0 0
    %1119 = vmatpush1.bf16.msra.mxu0 %v1089
    %1120 = vmatprep.subr.bf16.mxu0 0
    %1121 = vmatpush1.bf16.msra.mxu0 %v1088
    %1122 = vmatprep.subr.bf16.mxu0 0
    %1123 = vmatpush1.bf16.msra.mxu0 %v1087
    %1124 = vmatprep.subr.bf16.mxu0 0
    %1125 = vmatpush1.bf16.msra.mxu0 %v1086
    %1126 = vmatprep.subr.bf16.mxu0 0
    %1127 = vmatpush1.bf16.msra.mxu0 %v1085
    %1128 = vmatprep.subr.bf16.mxu0 0
    %1129 = vmatpush1.bf16.msra.mxu0 %v1084
    %1130 = vmatprep.subr.bf16.mxu0 0
    %1131 = vmatpush2.bf16.msra.mxu0 0
    %1132 = vmatprep.subr.bf16.mxu0 0
    %1133 = vmatpush2.bf16.msra.mxu0 0
    %1134 = vmatprep.subr.bf16.mxu0 0
    %1135 = vmatpush2.bf16.msra.mxu0 0
    %1136 = vmatprep.subr.bf16.mxu0 0
    %1137 = vmatpush2.bf16.msra.mxu0 0
    %1138 = vmatprep.subr.bf16.mxu0 0
    %1139 = vmatpush2.bf16.msra.mxu0 %v1095
    %1140 = vmatprep.subr.bf16.mxu0 0
    %1141 = vmatpush2.bf16.msra.mxu0 %v1094
    %1142 = vmatprep.subr.bf16.mxu0 0
    %1143 = vmatpush2.bf16.msra.mxu0 %v1093
    %1144 = vmatprep.subr.bf16.mxu0 0
    %1145 = vmatpush2.bf16.msra.mxu0 %v1092
    %1146 = vmatprep.mubr.bf16.mxu0 %v1109
    %1147 = vmatmul.mubr.bf16.gmra.mxu0 %v1001
    %v1148 = vpop.f32.mrf.mxu0
    %v1149 = vadd.f32 %v1034, %v1148
    %v1150 = vpop.f32.mrf.mxu0
    %v1151 = vpop.f32.mrf.mxu0
    %v1152 = vadd.f32 %v1034, %v1151
    %v1153 = vpop.f32.mrf.mxu0
    %1154 = vmatprep.mubr.bf16.mxu0 %v1112
    %1155 = vmatmul.mubr.bf16.gmra.mxu0 %v1003
    %v1156 = vpop.f32.mrf.mxu0
    %v1157 = vadd.f32 %v1034, %v1156
    %v1158 = vpop.f32.mrf.mxu0
    %v1159 = vpop.f32.mrf.mxu0
    %v1160 = vadd.f32 %v1034, %v1159
    %v1161 = vpop.f32.mrf.mxu0
    %1162 = vdwg.mxu0
    %v1163 = vadd.f32 %v1149, %v1152
    %v1164 = vrot.slane %v1163, 4
    %v1165 = vadd.f32 %v1163, %v1164
    %v1166 = vrot.slane %v1165, 2
    %v1167 = vadd.f32 %v1165, %v1166
    %v1168 = vrot.slane %v1167, 1
    %v1169 = vadd.f32 %v1167, %v1168
    %v1170 = vadd.f32 %v1157, %v1160
    %v1171 = vrot.slane %v1170, 4
    %v1172 = vadd.f32 %v1170, %v1171
    %v1173 = vrot.slane %v1172, 2
    %v1174 = vadd.f32 %v1172, %v1173
    %v1175 = vrot.slane %v1174, 1
    %v1176 = vadd.f32 %v1174, %v1175
    %v1177 = vmul.f32 %v1149, %v1149
    %v1178 = vmul.f32 %v1152, %v1152
    %v1179 = vmul.f32 %v1157, %v1157
    %v1180 = vmul.f32 %v1160, %v1160
    %v1181 = vadd.f32 %v1177, %v1178
    %v1182 = vrot.slane %v1181, 4
    %v1183 = vadd.f32 %v1181, %v1182
    %v1184 = vrot.slane %v1183, 2
    %v1185 = vadd.f32 %v1183, %v1184
    %v1186 = vrot.slane %v1185, 1
    %v1187 = vadd.f32 %v1185, %v1186
    %v1188 = vadd.f32 %v1179, %v1180
    %v1189 = vrot.slane %v1188, 4
    %v1190 = vadd.f32 %v1188, %v1189
    %v1191 = vrot.slane %v1190, 2
    %v1192 = vadd.f32 %v1190, %v1191
    %v1193 = vrot.slane %v1192, 1
    %v1194 = vadd.f32 %v1192, %v1193
    %1197 = vrot.lane.b32.xlu0 %v1169, 120
    %v1198 = vpop.permute.xlu0 %1197
    %1199 = vrot.lane.b32.xlu0 %v1176, 120
    %v1200 = vpop.permute.xlu0 %1199
    %1201 = vrot.lane.b32.xlu0 %v1169, 112
    %v1202 = vpop.permute.xlu0 %1201
    %1203 = vrot.lane.b32.xlu0 %v1176, 112
    %v1204 = vpop.permute.xlu0 %1203
    %1205 = vrot.lane.b32.xlu0 %v1169, 104
    %v1206 = vpop.permute.xlu0 %1205
    %1207 = vrot.lane.b32.xlu0 %v1176, 104
    %v1208 = vpop.permute.xlu0 %1207
    %1209 = vrot.lane.b32.xlu0 %v1169, 96
    %v1210 = vpop.permute.xlu0 %1209
    %1211 = vrot.lane.b32.xlu0 %v1176, 96
    %v1212 = vpop.permute.xlu0 %1211
    %1213 = vrot.lane.b32.xlu0 %v1169, 88
    %v1214 = vpop.permute.xlu0 %1213
    %1215 = vrot.lane.b32.xlu0 %v1176, 88
    %v1216 = vpop.permute.xlu0 %1215
    %1217 = vrot.lane.b32.xlu0 %v1169, 80
    %v1218 = vpop.permute.xlu0 %1217
    %1219 = vrot.lane.b32.xlu0 %v1176, 80
    %v1220 = vpop.permute.xlu0 %1219
    %1221 = vrot.lane.b32.xlu0 %v1169, 72
    %v1222 = vpop.permute.xlu0 %1221
    %1223 = vrot.lane.b32.xlu0 %v1176, 72
    %v1224 = vpop.permute.xlu0 %1223
    %1225 = vrot.lane.b32.xlu0 %v1169, 64
    %v1226 = vpop.permute.xlu0 %1225
    %1227 = vrot.lane.b32.xlu0 %v1176, 64
    %v1228 = vpop.permute.xlu0 %1227
    %1229 = vrot.lane.b32.xlu0 %v1169, 56
    %v1230 = vpop.permute.xlu0 %1229
    %1231 = vrot.lane.b32.xlu0 %v1176, 56
    %v1232 = vpop.permute.xlu0 %1231
    %1233 = vrot.lane.b32.xlu0 %v1169, 48
    %v1234 = vpop.permute.xlu0 %1233
    %1235 = vrot.lane.b32.xlu0 %v1176, 48
    %v1236 = vpop.permute.xlu0 %1235
    %1237 = vrot.lane.b32.xlu0 %v1169, 40
    %v1238 = vpop.permute.xlu0 %1237
    %1239 = vrot.lane.b32.xlu0 %v1176, 40
    %v1240 = vpop.permute.xlu0 %1239
    %1241 = vrot.lane.b32.xlu0 %v1169, 32
    %v1242 = vpop.permute.xlu0 %1241
    %1243 = vrot.lane.b32.xlu0 %v1176, 32
    %v1244 = vpop.permute.xlu0 %1243
    %1245 = vrot.lane.b32.xlu0 %v1169, 24
    %v1246 = vpop.permute.xlu0 %1245
    %1247 = vrot.lane.b32.xlu0 %v1176, 24
    %v1248 = vpop.permute.xlu0 %1247
    %1249 = vrot.lane.b32.xlu0 %v1169, 16
    %v1250 = vpop.permute.xlu0 %1249
    %1251 = vrot.lane.b32.xlu0 %v1176, 16
    %v1252 = vpop.permute.xlu0 %1251
    %1253 = vrot.lane.b32.xlu0 %v1169, 8
    %v1254 = vpop.permute.xlu0 %1253
    %1255 = vrot.lane.b32.xlu0 %v1176, 8
    %v1256 = vpop.permute.xlu0 %1255
    %v1257 = vrot.slane %v1176, 7
    %v1258 = vsel %vm189, %v1257, %v1169
    %v1259 = vrot.slane %v1200, 7
    %v1260 = vsel %vm189, %v1259, %v1198
    %v1261 = vrot.slane %v1204, 7
    %v1262 = vsel %vm189, %v1261, %v1202
    %v1263 = vrot.slane %v1208, 7
    %v1264 = vsel %vm189, %v1263, %v1206
    %v1265 = vrot.slane %v1212, 7
    %v1266 = vsel %vm189, %v1265, %v1210
    %v1267 = vrot.slane %v1216, 7
    %v1268 = vsel %vm189, %v1267, %v1214
    %v1269 = vrot.slane %v1220, 7
    %v1270 = vsel %vm189, %v1269, %v1218
    %v1271 = vrot.slane %v1224, 7
    %v1272 = vsel %vm189, %v1271, %v1222
    %v1273 = vrot.slane %v1228, 7
    %v1274 = vsel %vm189, %v1273, %v1226
    %v1275 = vrot.slane %v1232, 7
    %v1276 = vsel %vm189, %v1275, %v1230
    %v1277 = vrot.slane %v1236, 7
    %v1278 = vsel %vm189, %v1277, %v1234
    %v1279 = vrot.slane %v1240, 7
    %v1280 = vsel %vm189, %v1279, %v1238
    %v1281 = vrot.slane %v1244, 7
    %v1282 = vsel %vm189, %v1281, %v1242
    %v1283 = vrot.slane %v1248, 7
    %v1284 = vsel %vm189, %v1283, %v1246
    %v1285 = vrot.slane %v1252, 7
    %v1286 = vsel %vm189, %v1285, %v1250
    %v1287 = vrot.slane %v1256, 7
    %v1288 = vsel %vm189, %v1287, %v1254
    %v1305 = vcombine.low %v1258, %v1262
    %v1307 = vunpack.c.l.s4 1983009808
    %v1308 = vunpack.c.0.s8 %v1307
    %v1309 = vlaneseq
    %v1310 = vshrl.u32 %v1309, 7
    %v1311 = vsub.s32 %v1308, %v1310
    %v1312 = vrot.slane %v1305, %v1311
    %v1313 = vcombine.low %v1260, %v1264
    %v1315 = vunpack.c.l.s4 1983009808
    %v1316 = vunpack.c.0.s8 %v1315
    %v1317 = vlaneseq
    %v1318 = vshrl.u32 %v1317, 7
    %v1319 = vsub.s32 %v1316, %v1318
    %v1320 = vrot.slane %v1313, %v1319
    %v1321 = vcombine.low %v1266, %v1270
    %v1323 = vunpack.c.l.s4 1983009808
    %v1324 = vunpack.c.0.s8 %v1323
    %v1325 = vlaneseq
    %v1326 = vshrl.u32 %v1325, 7
    %v1327 = vsub.s32 %v1324, %v1326
    %v1328 = vrot.slane %v1321, %v1327
    %v1329 = vcombine.low %v1268, %v1272
    %v1331 = vunpack.c.l.s4 1983009808
    %v1332 = vunpack.c.0.s8 %v1331
    %v1333 = vlaneseq
    %v1334 = vshrl.u32 %v1333, 7
    %v1335 = vsub.s32 %v1332, %v1334
    %v1336 = vrot.slane %v1329, %v1335
    %v1337 = vcombine.low %v1312, %v1320
    %v1339 = vunpack.c.l.s4 1934713408
    %v1340 = vunpack.c.0.s8 %v1339
    %v1341 = vlaneseq
    %v1342 = vshrl.u32 %v1341, 7
    %v1343 = vsub.s32 %v1340, %v1342
    %v1344 = vrot.slane %v1337, %v1343
    %v1345 = vcombine.low %v1328, %v1336
    %v1347 = vunpack.c.l.s4 1934713408
    %v1348 = vunpack.c.0.s8 %v1347
    %v1349 = vlaneseq
    %v1350 = vshrl.u32 %v1349, 7
    %v1351 = vsub.s32 %v1348, %v1350
    %v1352 = vrot.slane %v1345, %v1351
    %v1353 = vcombine.low %v1344, %v1352
    %v1354 = vcombine.high %v1344, %v1352
    %v1355 = vcombine.low %v1274, %v1278
    %v1357 = vunpack.c.l.s4 1983009808
    %v1358 = vunpack.c.0.s8 %v1357
    %v1359 = vlaneseq
    %v1360 = vshrl.u32 %v1359, 7
    %v1361 = vsub.s32 %v1358, %v1360
    %v1362 = vrot.slane %v1355, %v1361
    %v1363 = vcombine.low %v1276, %v1280
    %v1365 = vunpack.c.l.s4 1983009808
    %v1366 = vunpack.c.0.s8 %v1365
    %v1367 = vlaneseq
    %v1368 = vshrl.u32 %v1367, 7
    %v1369 = vsub.s32 %v1366, %v1368
    %v1370 = vrot.slane %v1363, %v1369
    %v1371 = vcombine.low %v1282, %v1286
    %v1373 = vunpack.c.l.s4 1983009808
    %v1374 = vunpack.c.0.s8 %v1373
    %v1375 = vlaneseq
    %v1376 = vshrl.u32 %v1375, 7
    %v1377 = vsub.s32 %v1374, %v1376
    %v1378 = vrot.slane %v1371, %v1377
    %v1379 = vcombine.low %v1284, %v1288
    %v1381 = vunpack.c.l.s4 1983009808
    %v1382 = vunpack.c.0.s8 %v1381
    %v1383 = vlaneseq
    %v1384 = vshrl.u32 %v1383, 7
    %v1385 = vsub.s32 %v1382, %v1384
    %v1386 = vrot.slane %v1379, %v1385
    %v1387 = vcombine.low %v1362, %v1370
    %v1389 = vunpack.c.l.s4 1934713408
    %v1390 = vunpack.c.0.s8 %v1389
    %v1391 = vlaneseq
    %v1392 = vshrl.u32 %v1391, 7
    %v1393 = vsub.s32 %v1390, %v1392
    %v1394 = vrot.slane %v1387, %v1393
    %v1395 = vcombine.low %v1378, %v1386
    %v1397 = vunpack.c.l.s4 1934713408
    %v1398 = vunpack.c.0.s8 %v1397
    %v1399 = vlaneseq
    %v1400 = vshrl.u32 %v1399, 7
    %v1401 = vsub.s32 %v1398, %v1400
    %v1402 = vrot.slane %v1395, %v1401
    %v1403 = vcombine.low %v1394, %v1402
    %v1404 = vcombine.high %v1394, %v1402
    %v1405 = vsel %vm648, %v1353, 0.0
    %v1406 = vsel %vm648, %v1403, 0.0
    %v1407 = vadd.f32 %v1405, %v1406
    %v1408 = vrot.slane %v1407, 4
    %v1409 = vadd.f32 %v1407, %v1408
    %v1410 = vrot.slane %v1409, 2
    %v1411 = vadd.f32 %v1409, %v1410
    %v1412 = vrot.slane %v1411, 1
    %v1413 = vadd.f32 %v1411, %v1412
    %v1414 = vsel %vm648, %v1354, 0.0
    %v1415 = vsel %vm648, %v1404, 0.0
    %v1416 = vadd.f32 %v1414, %v1415
    %v1417 = vrot.slane %v1416, 4
    %v1418 = vadd.f32 %v1416, %v1417
    %v1419 = vrot.slane %v1418, 2
    %v1420 = vadd.f32 %v1418, %v1419
    %v1421 = vrot.slane %v1420, 1
    %v1422 = vadd.f32 %v1420, %v1421
    %1425 = vrot.lane.b32.xlu0 %v1187, 120
    %v1426 = vpop.permute.xlu0 %1425
    %1427 = vrot.lane.b32.xlu0 %v1194, 120
    %v1428 = vpop.permute.xlu0 %1427
    %1429 = vrot.lane.b32.xlu0 %v1187, 112
    %v1430 = vpop.permute.xlu0 %1429
    %1431 = vrot.lane.b32.xlu0 %v1194, 112
    %v1432 = vpop.permute.xlu0 %1431
    %1433 = vrot.lane.b32.xlu0 %v1187, 104
    %v1434 = vpop.permute.xlu0 %1433
    %1435 = vrot.lane.b32.xlu0 %v1194, 104
    %v1436 = vpop.permute.xlu0 %1435
    %1437 = vrot.lane.b32.xlu0 %v1187, 96
    %v1438 = vpop.permute.xlu0 %1437
    %1439 = vrot.lane.b32.xlu0 %v1194, 96
    %v1440 = vpop.permute.xlu0 %1439
    %1441 = vrot.lane.b32.xlu0 %v1187, 88
    %v1442 = vpop.permute.xlu0 %1441
    %1443 = vrot.lane.b32.xlu0 %v1194, 88
    %v1444 = vpop.permute.xlu0 %1443
    %1445 = vrot.lane.b32.xlu0 %v1187, 80
    %v1446 = vpop.permute.xlu0 %1445
    %1447 = vrot.lane.b32.xlu0 %v1194, 80
    %v1448 = vpop.permute.xlu0 %1447
    %1449 = vrot.lane.b32.xlu0 %v1187, 72
    %v1450 = vpop.permute.xlu0 %1449
    %1451 = vrot.lane.b32.xlu0 %v1194, 72
    %v1452 = vpop.permute.xlu0 %1451
    %1453 = vrot.lane.b32.xlu0 %v1187, 64
    %v1454 = vpop.permute.xlu0 %1453
    %1455 = vrot.lane.b32.xlu0 %v1194, 64
    %v1456 = vpop.permute.xlu0 %1455
    %1457 = vrot.lane.b32.xlu0 %v1187, 56
    %v1458 = vpop.permute.xlu0 %1457
    %1459 = vrot.lane.b32.xlu0 %v1194, 56
    %v1460 = vpop.permute.xlu0 %1459
    %1461 = vrot.lane.b32.xlu0 %v1187, 48
    %v1462 = vpop.permute.xlu0 %1461
    %1463 = vrot.lane.b32.xlu0 %v1194, 48
    %v1464 = vpop.permute.xlu0 %1463
    %1465 = vrot.lane.b32.xlu0 %v1187, 40
    %v1466 = vpop.permute.xlu0 %1465
    %1467 = vrot.lane.b32.xlu0 %v1194, 40
    %v1468 = vpop.permute.xlu0 %1467
    %1469 = vrot.lane.b32.xlu0 %v1187, 32
    %v1470 = vpop.permute.xlu0 %1469
    %1471 = vrot.lane.b32.xlu0 %v1194, 32
    %v1472 = vpop.permute.xlu0 %1471
    %1473 = vrot.lane.b32.xlu0 %v1187, 24
    %v1474 = vpop.permute.xlu0 %1473
    %1475 = vrot.lane.b32.xlu0 %v1194, 24
    %v1476 = vpop.permute.xlu0 %1475
    %1477 = vrot.lane.b32.xlu0 %v1187, 16
    %v1478 = vpop.permute.xlu0 %1477
    %1479 = vrot.lane.b32.xlu0 %v1194, 16
    %v1480 = vpop.permute.xlu0 %1479
    %1481 = vrot.lane.b32.xlu0 %v1187, 8
    %v1482 = vpop.permute.xlu0 %1481
    %1483 = vrot.lane.b32.xlu0 %v1194, 8
    %v1484 = vpop.permute.xlu0 %1483
    %v1485 = vrot.slane %v1194, 7
    %v1486 = vsel %vm189, %v1485, %v1187
    %v1487 = vrot.slane %v1428, 7
    %v1488 = vsel %vm189, %v1487, %v1426
    %v1489 = vrot.slane %v1432, 7
    %v1490 = vsel %vm189, %v1489, %v1430
    %v1491 = vrot.slane %v1436, 7
    %v1492 = vsel %vm189, %v1491, %v1434
    %v1493 = vrot.slane %v1440, 7
    %v1494 = vsel %vm189, %v1493, %v1438
    %v1495 = vrot.slane %v1444, 7
    %v1496 = vsel %vm189, %v1495, %v1442
    %v1497 = vrot.slane %v1448, 7
    %v1498 = vsel %vm189, %v1497, %v1446
    %v1499 = vrot.slane %v1452, 7
    %v1500 = vsel %vm189, %v1499, %v1450
    %v1501 = vrot.slane %v1456, 7
    %v1502 = vsel %vm189, %v1501, %v1454
    %v1503 = vrot.slane %v1460, 7
    %v1504 = vsel %vm189, %v1503, %v1458
    %v1505 = vrot.slane %v1464, 7
    %v1506 = vsel %vm189, %v1505, %v1462
    %v1507 = vrot.slane %v1468, 7
    %v1508 = vsel %vm189, %v1507, %v1466
    %v1509 = vrot.slane %v1472, 7
    %v1510 = vsel %vm189, %v1509, %v1470
    %v1511 = vrot.slane %v1476, 7
    %v1512 = vsel %vm189, %v1511, %v1474
    %v1513 = vrot.slane %v1480, 7
    %v1514 = vsel %vm189, %v1513, %v1478
    %v1515 = vrot.slane %v1484, 7
    %v1516 = vsel %vm189, %v1515, %v1482
    %v1533 = vcombine.low %v1486, %v1490
    %v1535 = vunpack.c.l.s4 1983009808
    %v1536 = vunpack.c.0.s8 %v1535
    %v1537 = vlaneseq
    %v1538 = vshrl.u32 %v1537, 7
    %v1539 = vsub.s32 %v1536, %v1538
    %v1540 = vrot.slane %v1533, %v1539
    %v1541 = vcombine.low %v1488, %v1492
    %v1543 = vunpack.c.l.s4 1983009808
    %v1544 = vunpack.c.0.s8 %v1543
    %v1545 = vlaneseq
    %v1546 = vshrl.u32 %v1545, 7
    %v1547 = vsub.s32 %v1544, %v1546
    %v1548 = vrot.slane %v1541, %v1547
    %v1549 = vcombine.low %v1494, %v1498
    %v1551 = vunpack.c.l.s4 1983009808
    %v1552 = vunpack.c.0.s8 %v1551
    %v1553 = vlaneseq
    %v1554 = vshrl.u32 %v1553, 7
    %v1555 = vsub.s32 %v1552, %v1554
    %v1556 = vrot.slane %v1549, %v1555
    %v1557 = vcombine.low %v1496, %v1500
    %v1559 = vunpack.c.l.s4 1983009808
    %v1560 = vunpack.c.0.s8 %v1559
    %v1561 = vlaneseq
    %v1562 = vshrl.u32 %v1561, 7
    %v1563 = vsub.s32 %v1560, %v1562
    %v1564 = vrot.slane %v1557, %v1563
    %v1565 = vcombine.low %v1540, %v1548
    %v1567 = vunpack.c.l.s4 1934713408
    %v1568 = vunpack.c.0.s8 %v1567
    %v1569 = vlaneseq
    %v1570 = vshrl.u32 %v1569, 7
    %v1571 = vsub.s32 %v1568, %v1570
    %v1572 = vrot.slane %v1565, %v1571
    %v1573 = vcombine.low %v1556, %v1564
    %v1575 = vunpack.c.l.s4 1934713408
    %v1576 = vunpack.c.0.s8 %v1575
    %v1577 = vlaneseq
    %v1578 = vshrl.u32 %v1577, 7
    %v1579 = vsub.s32 %v1576, %v1578
    %v1580 = vrot.slane %v1573, %v1579
    %v1581 = vcombine.low %v1572, %v1580
    %v1582 = vcombine.high %v1572, %v1580
    %v1583 = vcombine.low %v1502, %v1506
    %v1585 = vunpack.c.l.s4 1983009808
    %v1586 = vunpack.c.0.s8 %v1585
    %v1587 = vlaneseq
    %v1588 = vshrl.u32 %v1587, 7
    %v1589 = vsub.s32 %v1586, %v1588
    %v1590 = vrot.slane %v1583, %v1589
    %v1591 = vcombine.low %v1504, %v1508
    %v1593 = vunpack.c.l.s4 1983009808
    %v1594 = vunpack.c.0.s8 %v1593
    %v1595 = vlaneseq
    %v1596 = vshrl.u32 %v1595, 7
    %v1597 = vsub.s32 %v1594, %v1596
    %v1598 = vrot.slane %v1591, %v1597
    %v1599 = vcombine.low %v1510, %v1514
    %v1601 = vunpack.c.l.s4 1983009808
    %v1602 = vunpack.c.0.s8 %v1601
    %v1603 = vlaneseq
    %v1604 = vshrl.u32 %v1603, 7
    %v1605 = vsub.s32 %v1602, %v1604
    %v1606 = vrot.slane %v1599, %v1605
    %v1607 = vcombine.low %v1512, %v1516
    %v1609 = vunpack.c.l.s4 1983009808
    %v1610 = vunpack.c.0.s8 %v1609
    %v1611 = vlaneseq
    %v1612 = vshrl.u32 %v1611, 7
    %v1613 = vsub.s32 %v1610, %v1612
    %v1614 = vrot.slane %v1607, %v1613
    %v1615 = vcombine.low %v1590, %v1598
    %v1617 = vunpack.c.l.s4 1934713408
    %v1618 = vunpack.c.0.s8 %v1617
    %v1619 = vlaneseq
    %v1620 = vshrl.u32 %v1619, 7
    %v1621 = vsub.s32 %v1618, %v1620
    %v1622 = vrot.slane %v1615, %v1621
    %v1623 = vcombine.low %v1606, %v1614
    %v1625 = vunpack.c.l.s4 1934713408
    %v1626 = vunpack.c.0.s8 %v1625
    %v1627 = vlaneseq
    %v1628 = vshrl.u32 %v1627, 7
    %v1629 = vsub.s32 %v1626, %v1628
    %v1630 = vrot.slane %v1623, %v1629
    %v1631 = vcombine.low %v1622, %v1630
    %v1632 = vcombine.high %v1622, %v1630
    %v1633 = vsel %vm648, %v1581, 0.0
    %v1634 = vsel %vm648, %v1631, 0.0
    %v1635 = vadd.f32 %v1633, %v1634
    %v1636 = vrot.slane %v1635, 4
    %v1637 = vadd.f32 %v1635, %v1636
    %v1638 = vrot.slane %v1637, 2
    %v1639 = vadd.f32 %v1637, %v1638
    %v1640 = vrot.slane %v1639, 1
    %v1641 = vadd.f32 %v1639, %v1640
    %v1642 = vsel %vm648, %v1582, 0.0
    %v1643 = vsel %vm648, %v1632, 0.0
    %v1644 = vadd.f32 %v1642, %v1643
    %v1645 = vrot.slane %v1644, 4
    %v1646 = vadd.f32 %v1644, %v1645
    %v1647 = vrot.slane %v1646, 2
    %v1648 = vadd.f32 %v1646, %v1647
    %v1649 = vrot.slane %v1648, 1
    %v1650 = vadd.f32 %v1648, %v1649
    %v1651 = vmul.f32 %v1413, 0.00390625
    %v1652 = vmul.f32 %v1422, 0.00390625
    %v1653 = vmul.f32 %v1641, 0.00390625
    %v1654 = vmul.f32 %v1650, 0.00390625
    %v1655 = vmul.f32 %v1651, %v1651
    %v1656 = vmul.f32 %v1652, %v1652
    %v1657 = vsub.f32 %v1653, %v1655
    %v1658 = vsub.f32 %v1654, %v1656
    %v1659 = vmax.f32 %v1657, 0.0
    %v1660 = vmax.f32 %v1658, 0.0
    %v1661 = vadd.f32 %v1659, 1e-05
    %v1662 = vadd.f32 %v1660, 1e-05
    %v1663 = vrsqrt.pop %v1661
    %v1664 = vrsqrt.pop %v1662
    %v1667 = vsel %vm189, %v1652, %v1651
    %1669 = vrot.lane.b32.xlu0 %v1667, 8
    %v1670 = vpop.permute.xlu0 %1669
    %1672 = vrot.lane.b32.xlu0 %v1667, 16
    %v1673 = vpop.permute.xlu0 %1672
    %1675 = vrot.lane.b32.xlu0 %v1667, 24
    %v1676 = vpop.permute.xlu0 %1675
    %1678 = vrot.lane.b32.xlu0 %v1667, 32
    %v1679 = vpop.permute.xlu0 %1678
    %1681 = vrot.lane.b32.xlu0 %v1667, 40
    %v1682 = vpop.permute.xlu0 %1681
    %1684 = vrot.lane.b32.xlu0 %v1667, 48
    %v1685 = vpop.permute.xlu0 %1684
    %1687 = vrot.lane.b32.xlu0 %v1667, 56
    %v1688 = vpop.permute.xlu0 %1687
    %1690 = vrot.lane.b32.xlu0 %v1667, 64
    %v1691 = vpop.permute.xlu0 %1690
    %1693 = vrot.lane.b32.xlu0 %v1667, 72
    %v1694 = vpop.permute.xlu0 %1693
    %1696 = vrot.lane.b32.xlu0 %v1667, 80
    %v1697 = vpop.permute.xlu0 %1696
    %1699 = vrot.lane.b32.xlu0 %v1667, 88
    %v1700 = vpop.permute.xlu0 %1699
    %1702 = vrot.lane.b32.xlu0 %v1667, 96
    %v1703 = vpop.permute.xlu0 %1702
    %1705 = vrot.lane.b32.xlu0 %v1667, 104
    %v1706 = vpop.permute.xlu0 %1705
    %1708 = vrot.lane.b32.xlu0 %v1667, 112
    %v1709 = vpop.permute.xlu0 %1708
    %1711 = vrot.lane.b32.xlu0 %v1667, 120
    %v1712 = vpop.permute.xlu0 %1711
    %v1714 = vsel %vm648, %v1667, %v1670
    %v1715 = vsel %vm652, %v1714, %v1673
    %v1716 = vsel %vm656, %v1715, %v1676
    %v1717 = vsel %vm660, %v1716, %v1679
    %v1718 = vsel %vm664, %v1717, %v1682
    %v1719 = vsel %vm668, %v1718, %v1685
    %v1720 = vsel %vm672, %v1719, %v1688
    %v1721 = vsel %vm85, %v1720, %v1691
    %vm1722 = vcmask 588800
    %v1723 = vsel %vm1722, %v1721, %v1694
    %vm1724 = vcmask 654336
    %v1725 = vsel %vm1724, %v1723, %v1697
    %vm1726 = vcmask 719872
    %v1727 = vsel %vm1726, %v1725, %v1700
    %vm1728 = vcmask 785408
    %v1729 = vsel %vm1728, %v1727, %v1703
    %vm1730 = vcmask 850944
    %v1731 = vsel %vm1730, %v1729, %v1706
    %vm1732 = vcmask 916480
    %v1733 = vsel %vm1732, %v1731, %v1709
    %vm1734 = vcmask 982016
    %v1735 = vsel %vm1734, %v1733, %v1712
    %v1738 = vunpack.c.l.s4 1966171168
    %v1739 = vunpack.c.0.s8 %v1738
    %v1740 = vlaneseq
    %v1741 = vshrl.u32 %v1740, 7
    %v1742 = vsub.s32 %v1739, %v1741
    %v1743 = vrot.slane %v1735, %v1742
    %v1744 = vcombine.high %v1743, %v1743
    %v1746 = vunpack.c.l.s4 1966171168
    %v1747 = vunpack.c.0.s8 %v1746
    %v1748 = vlaneseq
    %v1749 = vshrl.u32 %v1748, 7
    %v1750 = vsub.s32 %v1747, %v1749
    %v1751 = vrot.slane %v1743, %v1750
    %v1753 = vunpack.c.l.s4 1966171168
    %v1754 = vunpack.c.0.s8 %v1753
    %v1755 = vlaneseq
    %v1756 = vshrl.u32 %v1755, 7
    %v1757 = vsub.s32 %v1754, %v1756
    %v1758 = vrot.slane %v1744, %v1757
    %v1763 = vsel %vm189, %v1664, %v1663
    %1765 = vrot.lane.b32.xlu0 %v1763, 8
    %v1766 = vpop.permute.xlu0 %1765
    %1768 = vrot.lane.b32.xlu0 %v1763, 16
    %v1769 = vpop.permute.xlu0 %1768
    %1771 = vrot.lane.b32.xlu0 %v1763, 24
    %v1772 = vpop.permute.xlu0 %1771
    %1774 = vrot.lane.b32.xlu0 %v1763, 32
    %v1775 = vpop.permute.xlu0 %1774
    %1777 = vrot.lane.b32.xlu0 %v1763, 40
    %v1778 = vpop.permute.xlu0 %1777
    %1780 = vrot.lane.b32.xlu0 %v1763, 48
    %v1781 = vpop.permute.xlu0 %1780
    %1783 = vrot.lane.b32.xlu0 %v1763, 56
    %v1784 = vpop.permute.xlu0 %1783
    %1786 = vrot.lane.b32.xlu0 %v1763, 64
    %v1787 = vpop.permute.xlu0 %1786
    %1789 = vrot.lane.b32.xlu0 %v1763, 72
    %v1790 = vpop.permute.xlu0 %1789
    %1792 = vrot.lane.b32.xlu0 %v1763, 80
    %v1793 = vpop.permute.xlu0 %1792
    %1795 = vrot.lane.b32.xlu0 %v1763, 88
    %v1796 = vpop.permute.xlu0 %1795
    %1798 = vrot.lane.b32.xlu0 %v1763, 96
    %v1799 = vpop.permute.xlu0 %1798
    %1801 = vrot.lane.b32.xlu0 %v1763, 104
    %v1802 = vpop.permute.xlu0 %1801
    %1804 = vrot.lane.b32.xlu0 %v1763, 112
    %v1805 = vpop.permute.xlu0 %1804
    %1807 = vrot.lane.b32.xlu0 %v1763, 120
    %v1808 = vpop.permute.xlu0 %1807
    %v1810 = vsel %vm648, %v1763, %v1766
    %v1811 = vsel %vm652, %v1810, %v1769
    %v1812 = vsel %vm656, %v1811, %v1772
    %v1813 = vsel %vm660, %v1812, %v1775
    %v1814 = vsel %vm664, %v1813, %v1778
    %v1815 = vsel %vm668, %v1814, %v1781
    %v1816 = vsel %vm672, %v1815, %v1784
    %v1817 = vsel %vm85, %v1816, %v1787
    %v1818 = vsel %vm1722, %v1817, %v1790
    %v1819 = vsel %vm1724, %v1818, %v1793
    %v1820 = vsel %vm1726, %v1819, %v1796
    %v1821 = vsel %vm1728, %v1820, %v1799
    %v1822 = vsel %vm1730, %v1821, %v1802
    %v1823 = vsel %vm1732, %v1822, %v1805
    %v1824 = vsel %vm1734, %v1823, %v1808
    %v1827 = vunpack.c.l.s4 1966171168
    %v1828 = vunpack.c.0.s8 %v1827
    %v1829 = vlaneseq
    %v1830 = vshrl.u32 %v1829, 7
    %v1831 = vsub.s32 %v1828, %v1830
    %v1832 = vrot.slane %v1824, %v1831
    %v1833 = vcombine.high %v1832, %v1832
    %v1835 = vunpack.c.l.s4 1966171168
    %v1836 = vunpack.c.0.s8 %v1835
    %v1837 = vlaneseq
    %v1838 = vshrl.u32 %v1837, 7
    %v1839 = vsub.s32 %v1836, %v1838
    %v1840 = vrot.slane %v1832, %v1839
    %v1842 = vunpack.c.l.s4 1966171168
    %v1843 = vunpack.c.0.s8 %v1842
    %v1844 = vlaneseq
    %v1845 = vshrl.u32 %v1844, 7
    %v1846 = vsub.s32 %v1843, %v1845
    %v1847 = vrot.slane %v1833, %v1846
    %v1850 = vld [vmem:[%s7] sm:$0x1]
    %v1851 = vmul.f32 %v1840, %v1850
    %v1852 = vmul.f32 %v1847, %v1850
    %v1855 = vlaneseq
    %v1856 = vshrl.u32 %v1855, 7
    %v1857 = vsub.s32 0, %v1856
    %v1858 = vrot.slane %v1851, %v1857
    %v1859 = vlaneseq
    %v1860 = vshrl.u32 %v1859, 7
    %v1861 = vsub.s32 0, %v1860
    %v1862 = vrot.slane %v1852, %v1861
    %v1865 = vmul.f32 %v1149, %v1858
    %v1866 = vmul.f32 %v1152, %v1858
    %v1867 = vmul.f32 %v1157, %v1862
    %v1868 = vmul.f32 %v1160, %v1862
    %v1869 = vld [vmem:[%s8] sm:$0x1]
    %v1870 = vmul.f32 %v1751, %v1851
    %v1871 = vmul.f32 %v1758, %v1852
    %v1872 = vsub.f32 %v1869, %v1870
    %v1873 = vsub.f32 %v1869, %v1871
    %v1876 = vlaneseq
    %v1877 = vshrl.u32 %v1876, 7
    %v1878 = vsub.s32 0, %v1877
    %v1879 = vrot.slane %v1872, %v1878
    %v1880 = vlaneseq
    %v1881 = vshrl.u32 %v1880, 7
    %v1882 = vsub.s32 0, %v1881
    %v1883 = vrot.slane %v1873, %v1882
    %v1886 = vadd.f32 %v1865, %v1879
    %v1887 = vadd.f32 %v1866, %v1879
    %v1888 = vadd.f32 %v1867, %v1883
    %v1889 = vadd.f32 %v1868, %v1883
    %v1890 = vmax.f32 %v1886, 0.0
    %v1891 = vmax.f32 %v1887, 0.0
    %v1892 = vmax.f32 %v1888, 0.0
    %v1893 = vmax.f32 %v1889, 0.0
    %v1894 = vrot.slane %v1890, 7
    %v1895 = vrot.slane %v1891, 7
    %v1896 = vrot.slane %v1892, 7
    %v1897 = vrot.slane %v1893, 7
    %v1898 = vsel %vm884, %v1896, %v1897
    %v1899 = vsel %vm884, %v1895, %v1896
    %v1900 = vsel %vm884, %v1894, %v1895
    %v1901 = vsel %vm884, %v1897, %v1894
    %v1902 = vsel %vm948, 0.0, %v1901
    %v1903 = vsel %vm949, 0.0, %v1900
    %v1904 = vsel %vm950, 0.0, %v1899
    %v1905 = vsel %vm951, 0.0, %v1898
    %v1906 = vrot.slane %v1890, 1
    %v1907 = vrot.slane %v1891, 1
    %v1908 = vrot.slane %v1892, 1
    %v1909 = vrot.slane %v1893, 1
    %v1910 = vsel %vm960, %v1908, %v1909
    %v1911 = vsel %vm960, %v1907, %v1908
    %v1912 = vsel %vm960, %v1906, %v1907
    %v1913 = vsel %vm960, %v1909, %v1906
    %v1914 = vsel %vm973, 0.0, %v1912
    %v1915 = vsel %vm974, 0.0, %v1911
    %v1916 = vsel %vm975, 0.0, %v1910
    %v1917 = vsel %vm976, 0.0, %v1913
    %v1918 = vpack.c.bf16 %v1903, %v1902
    %v1919 = vpack.c.bf16 %v1891, %v1890
    %v1920 = vpack.c.bf16 %v1915, %v1914
    %v1921 = vpack.c.bf16 %v875, %v874
    %v1922 = vpack.c.bf16 %v1905, %v1904
    %v1923 = vpack.c.bf16 %v1893, %v1892
    %v1924 = vpack.c.bf16 %v1917, %v1916
    %v1925 = vpack.c.bf16 %v877, %v876
    %v1926 = vld [vmem:[#allocation7] sm:$0xf]
    %v1927 = vld [vmem:[#allocation7 + $0x4] sm:$0xf]
    %v1928 = vld [vmem:[#allocation7 + $0x8] sm:$0xf]
    %v1929 = vld [vmem:[#allocation7 + $0xc] sm:$0xf]
    %v1930 = vld [vmem:[#allocation7 + $0x10] sm:$0xf]
    %v1931 = vld [vmem:[#allocation7 + $0x14] sm:$0xf]
    %v1932 = vld [vmem:[#allocation7 + $0x18] sm:$0xf]
    %v1933 = vld [vmem:[#allocation7 + $0x1c] sm:$0xf]
    %v1934 = vld [vmem:[#allocation7 + $0x20] sm:$0xf]
    %v1935 = vld [vmem:[#allocation7 + $0x24] sm:$0xf]
    %v1936 = vld [vmem:[#allocation7 + $0x28] sm:$0xf]
    %v1937 = vld [vmem:[#allocation7 + $0x2c] sm:$0xf]
    %v1938 = vld [vmem:[#allocation7 + $0x30] sm:$0xf]
    %v1939 = vld [vmem:[#allocation7 + $0x34] sm:$0xf]
    %v1940 = vld [vmem:[#allocation7 + $0x38] sm:$0xf]
    %v1941 = vld [vmem:[#allocation7 + $0x3c] sm:$0xf]
    %v1942 = vld [vmem:[#allocation7 + $0x40] sm:$0xf]
    %v1943 = vld [vmem:[#allocation7 + $0x44] sm:$0xf]
    %v1944 = vld [vmem:[#allocation7 + $0x48] sm:$0xf]
    %v1945 = vld [vmem:[#allocation7 + $0x4c] sm:$0xf]
    %v1946 = vld [vmem:[#allocation7 + $0x50] sm:$0xf]
    %v1947 = vld [vmem:[#allocation7 + $0x54] sm:$0xf]
    %v1948 = vld [vmem:[#allocation7 + $0x58] sm:$0xf]
    %v1949 = vld [vmem:[#allocation7 + $0x5c] sm:$0xf]
    %v1950 = vld [vmem:[#allocation7 + $0x60] sm:$0xf]
    %v1951 = vld [vmem:[#allocation7 + $0x64] sm:$0xf]
    %v1952 = vld [vmem:[#allocation7 + $0x68] sm:$0xf]
    %v1953 = vld [vmem:[#allocation7 + $0x6c] sm:$0xf]
    %v1954 = vld [vmem:[#allocation7 + $0x70] sm:$0xf]
    %v1955 = vld [vmem:[#allocation7 + $0x74] sm:$0xf]
    %v1956 = vld [vmem:[#allocation7 + $0x78] sm:$0xf]
    %v1957 = vld [vmem:[#allocation7 + $0x7c] sm:$0xf]
    %v1958 = vld [vmem:[#allocation7 + $0x80] sm:$0xf]
    %v1959 = vld [vmem:[#allocation7 + $0x84] sm:$0xf]
    %v1960 = vld [vmem:[#allocation7 + $0x88] sm:$0xf]
    %v1961 = vld [vmem:[#allocation7 + $0x8c] sm:$0xf]
    %v1962 = vld [vmem:[#allocation7 + $0x90] sm:$0xf]
    %v1963 = vld [vmem:[#allocation7 + $0x94] sm:$0xf]
    %v1964 = vld [vmem:[#allocation7 + $0x98] sm:$0xf]
    %v1965 = vld [vmem:[#allocation7 + $0x9c] sm:$0xf]
    %v1966 = vld [vmem:[#allocation7 + $0xa0] sm:$0xf]
    %v1967 = vld [vmem:[#allocation7 + $0xa4] sm:$0xf]
    %v1968 = vld [vmem:[#allocation7 + $0xa8] sm:$0xf]
    %v1969 = vld [vmem:[#allocation7 + $0xac] sm:$0xf]
    %v1970 = vld [vmem:[#allocation7 + $0xb0] sm:$0xf]
    %v1971 = vld [vmem:[#allocation7 + $0xb4] sm:$0xf]
    %v1972 = vld [vmem:[#allocation7 + $0xb8] sm:$0xf]
    %v1973 = vld [vmem:[#allocation7 + $0xbc] sm:$0xf]
    %v1974 = vld [vmem:[#allocation7 + $0xc0] sm:$0xf]
    %v1975 = vld [vmem:[#allocation7 + $0xc4] sm:$0xf]
    %v1976 = vld [vmem:[#allocation7 + $0xc8] sm:$0xf]
    %v1977 = vld [vmem:[#allocation7 + $0xcc] sm:$0xf]
    %v1978 = vld [vmem:[#allocation7 + $0xd0] sm:$0xf]
    %v1979 = vld [vmem:[#allocation7 + $0xd4] sm:$0xf]
    %v1980 = vld [vmem:[#allocation7 + $0xd8] sm:$0xf]
    %v1981 = vld [vmem:[#allocation7 + $0xdc] sm:$0xf]
    %v1982 = vld [vmem:[%s10] sm:$0x1]
    %v1984 = vlaneseq
    %v1985 = vshrl.u32 %v1984, 7
    %v1986 = vsub.s32 0, %v1985
    %v1987 = vrot.slane %v1982, %v1986
    %v2045 = vunpack.c.l.b16 %v1926
    %v2046 = vunpack.c.l.b16 %v1927
    %v2047 = vunpack.c.l.b16 %v1928
    %v2048 = vunpack.c.l.b16 %v1929
    %v2049 = vunpack.c.l.b16 %v1930
    %v2050 = vunpack.c.l.b16 %v1931
    %v2051 = vunpack.c.l.b16 %v1932
    %v2052 = vunpack.c.l.b16 %v1933
    %v2053 = vunpack.c.l.b16 %v1934
    %v2054 = vunpack.c.l.b16 %v1935
    %v2055 = vunpack.c.l.b16 %v1936
    %v2056 = vunpack.c.l.b16 %v1937
    %v2057 = vunpack.c.l.b16 %v1938
    %v2058 = vunpack.c.l.b16 %v1939
    %v2059 = vunpack.c.l.b16 %v1940
    %v2060 = vunpack.c.l.b16 %v1941
    %v2061 = vunpack.c.l.b16 %v1942
    %v2062 = vunpack.c.l.b16 %v1943
    %v2063 = vunpack.c.l.b16 %v1944
    %v2064 = vunpack.c.l.b16 %v1945
    %v2065 = vunpack.c.l.b16 %v1946
    %v2066 = vunpack.c.l.b16 %v1947
    %v2067 = vunpack.c.l.b16 %v1948
    %v2068 = vunpack.c.l.b16 %v1949
    %v2069 = vunpack.c.l.b16 %v1950
    %v2070 = vunpack.c.l.b16 %v1951
    %v2071 = vunpack.c.l.b16 %v1952
    %v2072 = vunpack.c.l.b16 %v1953
    %v2073 = vunpack.c.l.b16 %v1954
    %v2074 = vunpack.c.l.b16 %v1955
    %v2075 = vunpack.c.l.b16 %v1956
    %v2076 = vunpack.c.l.b16 %v1957
    %v2077 = vunpack.c.l.b16 %v1958
    %v2078 = vunpack.c.l.b16 %v1959
    %v2079 = vunpack.c.l.b16 %v1960
    %v2080 = vunpack.c.l.b16 %v1961
    %v2081 = vunpack.c.l.b16 %v1962
    %v2082 = vunpack.c.l.b16 %v1963
    %v2083 = vunpack.c.l.b16 %v1964
    %v2084 = vunpack.c.l.b16 %v1965
    %v2085 = vunpack.c.l.b16 %v1966
    %v2086 = vunpack.c.l.b16 %v1967
    %v2087 = vunpack.c.l.b16 %v1968
    %v2088 = vunpack.c.l.b16 %v1969
    %v2089 = vunpack.c.l.b16 %v1970
    %v2090 = vunpack.c.l.b16 %v1971
    %v2091 = vunpack.c.l.b16 %v1972
    %v2092 = vunpack.c.l.b16 %v1973
    %v2093 = vunpack.c.l.b16 %v1974
    %v2094 = vunpack.c.l.b16 %v1975
    %v2095 = vunpack.c.l.b16 %v1976
    %v2096 = vunpack.c.l.b16 %v1977
    %v2097 = vunpack.c.l.b16 %v1978
    %v2098 = vunpack.c.l.b16 %v1979
    %v2099 = vunpack.c.l.b16 %v1980
    %v2100 = vunpack.c.l.b16 %v1981
    %v2101 = vpack.c.b16 %v2046, %v2045
    %v2102 = vpack.c.b16 %v2048, %v2047
    %v2103 = vpack.c.b16 %v2050, %v2049
    %v2104 = vpack.c.b16 %v2052, %v2051
    %v2105 = vpack.c.b16 %v2054, %v2053
    %v2106 = vpack.c.b16 %v2056, %v2055
    %v2107 = vpack.c.b16 %v2058, %v2057
    %v2108 = vpack.c.b16 %v2060, %v2059
    %v2109 = vpack.c.b16 %v2062, %v2061
    %v2110 = vpack.c.b16 %v2064, %v2063
    %v2111 = vpack.c.b16 %v2066, %v2065
    %v2112 = vpack.c.b16 %v2068, %v2067
    %v2113 = vpack.c.b16 %v2070, %v2069
    %v2114 = vpack.c.b16 %v2072, %v2071
    %v2115 = vpack.c.b16 %v2074, %v2073
    %v2116 = vpack.c.b16 %v2076, %v2075
    %v2117 = vpack.c.b16 %v2078, %v2077
    %v2118 = vpack.c.b16 %v2080, %v2079
    %v2119 = vpack.c.b16 %v2082, %v2081
    %v2120 = vpack.c.b16 %v2084, %v2083
    %v2121 = vpack.c.b16 %v2086, %v2085
    %v2122 = vpack.c.b16 %v2088, %v2087
    %v2123 = vpack.c.b16 %v2090, %v2089
    %v2124 = vpack.c.b16 %v2092, %v2091
    %v2125 = vpack.c.b16 %v2094, %v2093
    %v2126 = vpack.c.b16 %v2096, %v2095
    %v2127 = vpack.c.b16 %v2098, %v2097
    %v2128 = vpack.c.b16 %v2100, %v2099
    %v2158 = vsel %vm85, %v1921, 0
    %v2161 = vsel %vm85, %v1925, 0
    %2163 = vmatprep.subr.bf16.mxu0 0
    %2164 = vmatpush1.bf16.msra.mxu0 %v2108
    %2165 = vmatprep.subr.bf16.mxu0 0
    %2166 = vmatpush1.bf16.msra.mxu0 %v2107
    %2167 = vmatprep.subr.bf16.mxu0 0
    %2168 = vmatpush1.bf16.msra.mxu0 %v2106
    %2169 = vmatprep.subr.bf16.mxu0 0
    %2170 = vmatpush1.bf16.msra.mxu0 %v2105
    %2171 = vmatprep.subr.bf16.mxu0 0
    %2172 = vmatpush1.bf16.msra.mxu0 %v2104
    %2173 = vmatprep.subr.bf16.mxu0 0
    %2174 = vmatpush1.bf16.msra.mxu0 %v2103
    %2175 = vmatprep.subr.bf16.mxu0 0
    %2176 = vmatpush1.bf16.msra.mxu0 %v2102
    %2177 = vmatprep.subr.bf16.mxu0 0
    %2178 = vmatpush1.bf16.msra.mxu0 %v2101
    %2179 = vmatprep.subr.bf16.mxu0 0
    %2180 = vmatpush2.bf16.msra.mxu0 %v2116
    %2181 = vmatprep.subr.bf16.mxu0 0
    %2182 = vmatpush2.bf16.msra.mxu0 %v2115
    %2183 = vmatprep.subr.bf16.mxu0 0
    %2184 = vmatpush2.bf16.msra.mxu0 %v2114
    %2185 = vmatprep.subr.bf16.mxu0 0
    %2186 = vmatpush2.bf16.msra.mxu0 %v2113
    %2187 = vmatprep.subr.bf16.mxu0 0
    %2188 = vmatpush2.bf16.msra.mxu0 %v2112
    %2189 = vmatprep.subr.bf16.mxu0 0
    %2190 = vmatpush2.bf16.msra.mxu0 %v2111
    %2191 = vmatprep.subr.bf16.mxu0 0
    %2192 = vmatpush2.bf16.msra.mxu0 %v2110
    %2193 = vmatprep.subr.bf16.mxu0 0
    %2194 = vmatpush2.bf16.msra.mxu0 %v2109
    %2195 = vmatprep.mubr.bf16.mxu0 %v1919
    %2196 = vmatmul.mubr.bf16.gmra.mxu0 %v1918
    %v2197 = vpop.f32.mrf.mxu0
    %v2198 = vadd.f32 %v1987, %v2197
    %v2199 = vpop.f32.mrf.mxu0
    %v2200 = vpop.f32.mrf.mxu0
    %v2201 = vadd.f32 %v1987, %v2200
    %v2202 = vpop.f32.mrf.mxu0
    %2203 = vmatprep.mubr.bf16.mxu0 %v1923
    %2204 = vmatmul.mubr.bf16.gmra.mxu0 %v1922
    %v2205 = vpop.f32.mrf.mxu0
    %v2206 = vadd.f32 %v1987, %v2205
    %v2207 = vpop.f32.mrf.mxu0
    %v2208 = vpop.f32.mrf.mxu0
    %v2209 = vadd.f32 %v1987, %v2208
    %v2210 = vpop.f32.mrf.mxu0
    %2211 = vdwg.mxu0
    %2212 = vmatprep.subr.bf16.mxu0 0
    %2213 = vmatpush1.bf16.msra.mxu0 %v2124
    %2214 = vmatprep.subr.bf16.mxu0 0
    %2215 = vmatpush1.bf16.msra.mxu0 %v2123
    %2216 = vmatprep.subr.bf16.mxu0 0
    %2217 = vmatpush1.bf16.msra.mxu0 %v2122
    %2218 = vmatprep.subr.bf16.mxu0 0
    %2219 = vmatpush1.bf16.msra.mxu0 %v2121
    %2220 = vmatprep.subr.bf16.mxu0 0
    %2221 = vmatpush1.bf16.msra.mxu0 %v2120
    %2222 = vmatprep.subr.bf16.mxu0 0
    %2223 = vmatpush1.bf16.msra.mxu0 %v2119
    %2224 = vmatprep.subr.bf16.mxu0 0
    %2225 = vmatpush1.bf16.msra.mxu0 %v2118
    %2226 = vmatprep.subr.bf16.mxu0 0
    %2227 = vmatpush1.bf16.msra.mxu0 %v2117
    %2228 = vmatprep.subr.bf16.mxu0 0
    %2229 = vmatpush2.bf16.msra.mxu0 0
    %2230 = vmatprep.subr.bf16.mxu0 0
    %2231 = vmatpush2.bf16.msra.mxu0 0
    %2232 = vmatprep.subr.bf16.mxu0 0
    %2233 = vmatpush2.bf16.msra.mxu0 0
    %2234 = vmatprep.subr.bf16.mxu0 0
    %2235 = vmatpush2.bf16.msra.mxu0 0
    %2236 = vmatprep.subr.bf16.mxu0 0
    %2237 = vmatpush2.bf16.msra.mxu0 %v2128
    %2238 = vmatprep.subr.bf16.mxu0 0
    %2239 = vmatpush2.bf16.msra.mxu0 %v2127
    %2240 = vmatprep.subr.bf16.mxu0 0
    %2241 = vmatpush2.bf16.msra.mxu0 %v2126
    %2242 = vmatprep.subr.bf16.mxu0 0
    %2243 = vmatpush2.bf16.msra.mxu0 %v2125
    %2244 = vmatprep.mubr.bf16.mxu0 %v2158
    %2245 = vmatmul.mubr.bf16.gmra.mxu0 %v1920
    %v2246 = vpop.f32.mrf.mxu0
    %v2247 = vadd.f32 %v2198, %v2246
    %v2248 = vpop.f32.mrf.mxu0
    %v2249 = vpop.f32.mrf.mxu0
    %v2250 = vadd.f32 %v2201, %v2249
    %v2251 = vpop.f32.mrf.mxu0
    %2252 = vmatprep.mubr.bf16.mxu0 %v2161
    %2253 = vmatmul.mubr.bf16.gmra.mxu0 %v1924
    %v2254 = vpop.f32.mrf.mxu0
    %v2255 = vadd.f32 %v2206, %v2254
    %v2256 = vpop.f32.mrf.mxu0
    %v2257 = vpop.f32.mrf.mxu0
    %v2258 = vadd.f32 %v2209, %v2257
    %v2259 = vpop.f32.mrf.mxu0
    %2260 = vdwg.mxu0
    %2261 = vst [vmem:[#allocation8] sm:$0xff] %v2247
    %2262 = vst [vmem:[#allocation8 + $0x8] sm:$0xff] %v2250
    %2263 = vst [vmem:[#allocation8 + $0x10] sm:$0xff] %v2255
    %2264 = vst [vmem:[#allocation8 + $0x18] sm:$0xff] %v2258
    // Predicated region
    $region58: #{tpu_custom_call.1} parent=1 // pred_check
      _
    $region59: #{tpu_custom_call.1} parent=1 // pred_check_branch
      %2266 = sbr.rel (0) target = $region61
    $region60: #{tpu_custom_call.1} parent=1 // pred_region
      %s2268 = ssub.s32 512, 512
      %2269 = vsyncadd [#allocation4], %s2268
      %s2270 = sshll.u32 [#allocation8], 4
      %s2271 = int_to_ptr.vmem [resolvable:$true] %s2270
      %2276 = dma.vmem_to_hbm [thread:$0]  %s2271, 512, %s11, [#allocation4], 128, 128, 8
    $region61: #{tpu_custom_call.1} parent=1 // pred_fallthru
      _
    // Predicated region
    $region62: #{tpu_custom_call.1} parent=1 // pred_check
      _
    $region63: #{tpu_custom_call.1} parent=1 // pred_check_branch
      %2278 = sbr.rel (0) target = $region65
    $region64: #{tpu_custom_call.1} parent=1 // pred_region
      %2279 = dma.done [#allocation4], 512
    $region65: #{tpu_custom_call.1} parent=1 // pred_fallthru
      _
    %2280 = vsyncpa [#allocation3], 1
    %2281 = vsyncpa [#allocation6], 1
    %2282 = vsyncpa [#allocation4], 1

</llo_original>
